<compile_context>
chip_gen: v7x
topology: tpu7x:2x2x1
jax: 0.10.0
libtpu: 0.0.40
codegen_flags: <defaults>
</compile_context>

<pallas_src>
import functools

import jax
import jax.numpy as jnp
from jax.experimental import pallas as pl
from jax.experimental.pallas import tpu as pltpu


# ----------------------------------------------------------------------------
# Fused kernel: conv1 + mask + relu, conv2 + mask, channel attention, residual
# ----------------------------------------------------------------------------
def _csrcab_kernel(x_ref, w1_ref, b1_ref, w2_ref, b2_ref,
                   m0_ref, m1_ref, cw1_ref, cb1_ref, cw2_ref, cb2_ref,
                   tapmask_ref, seg_ref,
                   out_ref, patch_ref,
                   *, C, HW, Bt, L, d_list, patch_dtype):
    # x_ref     : (1, C, L)  L = Bt*HW, Bt images folded along lanes
    # w{1,2}    : (C, 9*C)   bf16 conv weights, columns ordered (kh, kw, ci)
    # b{1,2}    : (C, 1)     f32
    # m{0,1}    : (1, C, Bt) per-image channel-mask scalars
    # cw1       : (C, Cr)    CA first 1x1 conv, transposed
    # cb1       : (1, Cr)
    # cw2       : (C, Cr)    CA second 1x1 conv
    # cb2       : (C, 1)
    # tapmask   : (9, L)     static boundary masks (hoisted to the wrapper)
    # seg       : (Bt, L)    static per-image segment indicators
    # patch_ref : (9*C, L)   persistent bf16 im2col scratch (reused everywhere)
    x2 = x_ref[0].astype(jnp.float32)                              # (C, L)

    def seg_bcast(cols):
        # (C, Bt) per-image scalars -> lane-broadcast over the folded axis.
        if Bt == 1:
            return cols                                            # (C, 1)
        out = cols[:, 0:1] * seg_ref[0:1, :]
        for b in range(1, Bt):
            out = out + cols[:, b:b + 1] * seg_ref[b:b + 1, :]
        return out                                                 # (C, L)

    def conv3x3(src, w_ref_, b_ref_):
        # Build the (9*C, L) im2col matrix with lane rolls + static boundary
        # masks directly into the bf16 VMEM scratch, then one MXU matmul.
        for t, d in enumerate(d_list):
            if d == 0:                                             # center tap
                slab = src
            else:
                slab = pltpu.roll(src, (-d) % L, axis=1) * tapmask_ref[t:t + 1, :]
            patch_ref[t * C:(t + 1) * C, :] = slab.astype(patch_dtype)
        return jnp.dot(w_ref_[...], patch_ref[...],
                       preferred_element_type=jnp.float32) + b_ref_[...]

    m0b = seg_bcast(m0_ref[0].astype(jnp.float32))
    m1b = seg_bcast(m1_ref[0].astype(jnp.float32))

    # conv1 + channel-selective mix + relu
    res = conv3x3(x2, w1_ref, b1_ref) * m1b + x2 * m0b
    res = jnp.maximum(res, 0.0)
    # conv2 + channel-selective mix
    res = conv3x3(res, w2_ref, b2_ref) * m1b + res * m0b

    # channel attention per folded image: avg pool -> 1x1 -> relu -> 1x1 -> sigmoid
    inv_hw = 1.0 / HW
    s_cols = []
    for b in range(Bt):
        if Bt == 1:
            y = jnp.sum(res, axis=1, keepdims=True) * inv_hw                    # (C, 1)
        else:
            y = jnp.sum(res * seg_ref[b:b + 1, :], axis=1, keepdims=True) * inv_hw
        h = jnp.sum(cw1_ref[...] * y, axis=0, keepdims=True) + cb1_ref[...]     # (1, Cr)
        h = jnp.maximum(h, 0.0)
        s = jnp.sum(cw2_ref[...] * h, axis=1, keepdims=True) + cb2_ref[...]     # (C, 1)
        s_cols.append(jax.nn.sigmoid(s))
    if Bt == 1:
        sb = s_cols[0]
    else:
        sb = s_cols[0] * seg_ref[0:1, :]
        for b in range(1, Bt):
            sb = sb + s_cols[b] * seg_ref[b:b + 1, :]

    out_ref[...] = ((res * sb + x2)[None]).astype(out_ref.dtype)


def csrcab_pallas(x, ch_mask, params, *, patch_dtype=jnp.bfloat16):
    """x: (B, C, H, W) NCHW.  ch_mask: (B, C, 1, 2).  params in PyTorch layouts:
       w1, w2: (C, C, 3, 3); b1, b2: (C,); cw1: (Cr, C); cb1: (Cr,);
       cw2: (C, Cr); cb2: (C,)."""
    w1, b1, w2, b2, cw1, cb1, cw2, cb2 = params
    B, C, H, W = x.shape
    HW = H * W
    Cr = cw1.shape[0]

    # --- batch folding: Bt images per grid step, folded into the lane axis ---
    # Keep >= 2 grid steps when B >= 2 (v7x megacore), cap lanes per step.
    Bt = 1
    for cand in range(B // 2, 0, -1):
        if B % cand == 0 and cand * HW <= 4096:
            Bt = cand
            break
    nsteps = B // Bt
    L = Bt * HW

    # --- one-time layout plumbing (wrapper side, plain XLA ops) ---
    x_f = x.reshape(nsteps, Bt, C, HW).transpose(0, 2, 1, 3).reshape(nsteps, C, L)
    w1_f = jnp.transpose(w1, (0, 2, 3, 1)).reshape(C, 9 * C).astype(patch_dtype)
    w2_f = jnp.transpose(w2, (0, 2, 3, 1)).reshape(C, 9 * C).astype(patch_dtype)
    b1_c = b1.reshape(C, 1).astype(jnp.float32)
    b2_c = b2.reshape(C, 1).astype(jnp.float32)
    m = ch_mask[:, :, 0, :]                                         # (B, C, 2)
    m0 = m[..., 0].reshape(nsteps, Bt, C).transpose(0, 2, 1)        # (nsteps, C, Bt)
    m1 = m[..., 1].reshape(nsteps, Bt, C).transpose(0, 2, 1)
    cw1_k = cw1.T                                                   # (C, Cr)
    cb1_r = cb1.reshape(1, Cr)
    cw2_k = cw2                                                     # (C, Cr)
    cb2_c = cb2.reshape(C, 1)

    # --- static per-tap boundary masks + per-image segment indicators ---
    pos = jnp.arange(HW)
    hh, ww = pos // W, pos % W
    d_list, rows = [], []
    for kh in range(3):
        for kw in range(3):
            dh, dw = kh - 1, kw - 1
            d_list.append(dh * W + dw)
            valid = ((hh + dh >= 0) & (hh + dh < H) &
                     (ww + dw >= 0) & (ww + dw < W))
            rows.append(valid.astype(jnp.float32))
    tapmask = jnp.tile(jnp.stack(rows, axis=0), (1, Bt))            # (9, L)
    seg = ((jnp.arange(L) // HW)[None, :] ==
           jnp.arange(Bt)[:, None]).astype(jnp.float32)             # (Bt, L)

    kernel = functools.partial(_csrcab_kernel, C=C, HW=HW, Bt=Bt, L=L,
                               d_list=tuple(d_list), patch_dtype=patch_dtype)
    out = pl.pallas_call(
        kernel,
        out_shape=jax.ShapeDtypeStruct((nsteps, C, L), x.dtype),
        grid=(nsteps,),
        in_specs=[
            pl.BlockSpec((1, C, L), lambda i: (i, 0, 0)),          # x (folded)
            pl.BlockSpec((C, 9 * C), lambda i: (0, 0)),            # conv1 w (bf16)
            pl.BlockSpec((C, 1), lambda i: (0, 0)),                # conv1 b
            pl.BlockSpec((C, 9 * C), lambda i: (0, 0)),            # conv2 w (bf16)
            pl.BlockSpec((C, 1), lambda i: (0, 0)),                # conv2 b
            pl.BlockSpec((1, C, Bt), lambda i: (i, 0, 0)),         # mask0
            pl.BlockSpec((1, C, Bt), lambda i: (i, 0, 0)),         # mask1
            pl.BlockSpec((C, Cr), lambda i: (0, 0)),               # CA w1^T
            pl.BlockSpec((1, Cr), lambda i: (0, 0)),               # CA b1
            pl.BlockSpec((C, Cr), lambda i: (0, 0)),               # CA w2
            pl.BlockSpec((C, 1), lambda i: (0, 0)),                # CA b2
            pl.BlockSpec((9, L), lambda i: (0, 0)),                # tap masks
            pl.BlockSpec((Bt, L), lambda i: (0, 0)),               # segment ind.
        ],
        out_specs=pl.BlockSpec((1, C, L), lambda i: (i, 0, 0)),
        scratch_shapes=[pltpu.VMEM((9 * C, L), patch_dtype)],      # im2col scratch
        compiler_params=pltpu.CompilerParams(
            dimension_semantics=("parallel",)),
    )(x_f, w1_f, b1_c, w2_f, b2_c, m0, m1, cw1_k, cb1_r, cw2_k, cb2_c,
      tapmask, seg)

    return (out.reshape(nsteps, C, Bt, HW).transpose(0, 2, 1, 3)
               .reshape(B, C, H, W))


# ----------------------------------------------------------------------------
# Pure-JAX reference (NCHW, matches the PyTorch module semantics).
# `mm_dtype` lets us build a mixed-precision reference that mirrors the
# kernel's bf16 MXU operands (f32 accumulation), for a tight correctness check.
# ----------------------------------------------------------------------------
def _conv3x3_ref(x, w, b, mm_dtype):
    B, C, H, W = x.shape
    xp = jnp.pad(x.astype(mm_dtype).astype(jnp.float32),
                 ((0, 0), (0, 0), (1, 1), (1, 1)))
    wq = w.astype(mm_dtype).astype(jnp.float32)
    out = jnp.zeros((B, w.shape[0], H, W), jnp.float32)
    for kh in range(3):
        for kw in range(3):
            out = out + jnp.einsum(
                'bchw,oc->bohw', xp[:, :, kh:kh + H, kw:kw + W], wq[:, :, kh, kw],
                precision=jax.lax.Precision.HIGHEST)
    return out + b.reshape(1, -1, 1, 1)


def csrcab_ref(x, ch_mask, params, mm_dtype=jnp.float32):
    w1, b1, w2, b2, cw1, cb1, cw2, cb2 = params
    m0 = ch_mask[:, :, :, 0:1]    # (B, C, 1, 1)
    m1 = ch_mask[:, :, :, 1:2]
    res = x
    res = _conv3x3_ref(res, w1, b1, mm_dtype) * m1 + res * m0
    res = jnp.maximum(res, 0.0)
    res = _conv3x3_ref(res, w2, b2, mm_dtype) * m1 + res * m0
    y = jnp.mean(res, axis=(2, 3))                               # (B, C)
    h = jnp.maximum(
        jnp.dot(y, cw1.T, precision=jax.lax.Precision.HIGHEST) + cb1, 0.0)
    s = jax.nn.sigmoid(
        jnp.dot(h, cw2.T, precision=jax.lax.Precision.HIGHEST) + cb2)
    return res * s[:, :, None, None] + x


if __name__ == "__main__":
    # B=4 exercises the batch fold (Bt=2 images per step, 2 parallel grid steps)
    B, C, H, W = 4, 16, 16, 16     # n_feat = 16
    reduction = 4
    Cr = C // reduction

    key = jax.random.PRNGKey(0)
    k = jax.random.split(key, 10)

    x = jax.random.normal(k[0], (B, C, H, W), jnp.float32)
    ch_mask = jax.random.uniform(k[1], (B, C, 1, 2), jnp.float32)

    # Synthetic parameters in the PyTorch layouts.
    w1 = 0.1 * jax.random.normal(k[2], (C, C, 3, 3), jnp.float32)
    b1 = 0.1 * jax.random.normal(k[3], (C,), jnp.float32)
    w2 = 0.1 * jax.random.normal(k[4], (C, C, 3, 3), jnp.float32)
    b2 = 0.1 * jax.random.normal(k[5], (C,), jnp.float32)
    cw1 = 0.1 * jax.random.normal(k[6], (Cr, C), jnp.float32)
    cb1 = 0.1 * jax.random.normal(k[7], (Cr,), jnp.float32)
    cw2 = 0.1 * jax.random.normal(k[8], (C, Cr), jnp.float32)
    cb2 = 0.1 * jax.random.normal(k[9], (C,), jnp.float32)
    params = (w1, b1, w2, b2, cw1, cb1, cw2, cb2)

    out = jax.block_until_ready(csrcab_pallas(x, ch_mask, params))
    assert out.shape == (B, C, H, W)

    # Tight check vs a reference whose conv operands are also bf16 (proves the
    # im2col indexing / masking / fold are exact), plus a looser check vs the
    # full-f32 reference (bf16 MXU operands compound across the two convs).
    ref_bf16 = csrcab_ref(x, ch_mask, params, mm_dtype=jnp.bfloat16)
    ref_f32 = csrcab_ref(x, ch_mask, params, mm_dtype=jnp.float32)
    err_m = float(jnp.max(jnp.abs(out - ref_bf16)))
    err_f = float(jnp.max(jnp.abs(out - ref_f32)))
    assert jnp.allclose(out, ref_bf16, rtol=1e-2, atol=1e-2), \
        f"mismatch vs bf16-matched reference, max err {err_m}"
    assert jnp.allclose(out, ref_f32, rtol=5e-2, atol=5e-2), \
        f"mismatch vs f32 reference, max err {err_f}"

    print("KERNEL_OK")
</pallas_src>

<mosaic_0001>
module attributes {stable_mosaic.version = 11 : i64} {
  func.func @_csrcab_kernel(%arg0: i32, %arg1: memref<1x16x512xf32, #tpu.memory_space<vmem>>, %arg2: memref<16x144xbf16, #tpu.memory_space<vmem>>, %arg3: memref<16x1xf32, #tpu.memory_space<vmem>>, %arg4: memref<16x144xbf16, #tpu.memory_space<vmem>>, %arg5: memref<16x1xf32, #tpu.memory_space<vmem>>, %arg6: memref<1x16x2xf32, #tpu.memory_space<vmem>>, %arg7: memref<1x16x2xf32, #tpu.memory_space<vmem>>, %arg8: memref<16x4xf32, #tpu.memory_space<vmem>>, %arg9: memref<1x4xf32, #tpu.memory_space<vmem>>, %arg10: memref<16x4xf32, #tpu.memory_space<vmem>>, %arg11: memref<16x1xf32, #tpu.memory_space<vmem>>, %arg12: memref<9x512xf32, #tpu.memory_space<vmem>>, %arg13: memref<2x512xf32, #tpu.memory_space<vmem>>, %arg14: memref<1x16x512xf32, #tpu.memory_space<vmem>>, %arg15: memref<144x512xbf16, #tpu.memory_space<vmem>>) attributes {dimension_semantics = [#tpu.dimension_semantics<parallel>], iteration_bounds = array<i64: 2>, scalar_prefetch = 0 : i64, scratch_operands = 1 : i64, tpu.core_type = #tpu.core_type<tc>, window_params = [{transform_indices = @transform_0, window_bounds = array<i64: 1, 16, 512>}, {pipeline_mode = #tpu.pipeline_mode<synchronous>, transform_indices = @transform_1, window_bounds = array<i64: 16, 144>}, {pipeline_mode = #tpu.pipeline_mode<synchronous>, transform_indices = @transform_2, window_bounds = array<i64: 16, 1>}, {pipeline_mode = #tpu.pipeline_mode<synchronous>, transform_indices = @transform_3, window_bounds = array<i64: 16, 144>}, {pipeline_mode = #tpu.pipeline_mode<synchronous>, transform_indices = @transform_4, window_bounds = array<i64: 16, 1>}, {transform_indices = @transform_5, window_bounds = array<i64: 1, 16, 2>}, {transform_indices = @transform_6, window_bounds = array<i64: 1, 16, 2>}, {pipeline_mode = #tpu.pipeline_mode<synchronous>, transform_indices = @transform_7, window_bounds = array<i64: 16, 4>}, {pipeline_mode = #tpu.pipeline_mode<synchronous>, transform_indices = @transform_8, window_bounds = array<i64: 1, 4>}, {pipeline_mode = #tpu.pipeline_mode<synchronous>, transform_indices = @transform_9, window_bounds = array<i64: 16, 4>}, {pipeline_mode = #tpu.pipeline_mode<synchronous>, transform_indices = @transform_10, window_bounds = array<i64: 16, 1>}, {pipeline_mode = #tpu.pipeline_mode<synchronous>, transform_indices = @transform_11, window_bounds = array<i64: 9, 512>}, {pipeline_mode = #tpu.pipeline_mode<synchronous>, transform_indices = @transform_12, window_bounds = array<i64: 2, 512>}, {transform_indices = @transform_13, window_bounds = array<i64: 1, 16, 512>}]} {
    %c0 = arith.constant 0 : index
    %c0_0 = arith.constant 0 : index
    %c0_1 = arith.constant 0 : index
    %0 = vector.load %arg1[%c0, %c0_0, %c0_1] : memref<1x16x512xf32, #tpu.memory_space<vmem>>, vector<1x16x512xf32>
    %1 = vector.shape_cast %0 : vector<1x16x512xf32> to vector<16x512xf32>
    %c0_2 = arith.constant 0 : index
    %c0_3 = arith.constant 0 : index
    %c0_4 = arith.constant 0 : index
    %2 = vector.load %arg6[%c0_2, %c0_3, %c0_4] : memref<1x16x2xf32, #tpu.memory_space<vmem>>, vector<1x16x2xf32>
    %3 = vector.shape_cast %2 : vector<1x16x2xf32> to vector<16x2xf32>
    %4 = vector.extract_strided_slice %3 {offsets = [0, 0], sizes = [16, 1], strides = [1, 1]} : vector<16x2xf32> to vector<16x1xf32>
    %c0_5 = arith.constant 0 : index
    %c0_6 = arith.constant 0 : index
    %5 = vector.load %arg13[%c0_5, %c0_6] : memref<2x512xf32, #tpu.memory_space<vmem>>, vector<1x512xf32>
    %6 = vector.broadcast %4 : vector<16x1xf32> to vector<16x512xf32>
    %7 = vector.broadcast %5 : vector<1x512xf32> to vector<16x512xf32>
    %8 = arith.mulf %6, %7 : vector<16x512xf32>
    %9 = vector.extract_strided_slice %3 {offsets = [0, 1], sizes = [16, 1], strides = [1, 1]} : vector<16x2xf32> to vector<16x1xf32>
    %c1 = arith.constant 1 : index
    %c0_7 = arith.constant 0 : index
    %10 = vector.load %arg13[%c1, %c0_7] : memref<2x512xf32, #tpu.memory_space<vmem>>, vector<1x512xf32>
    %11 = vector.broadcast %9 : vector<16x1xf32> to vector<16x512xf32>
    %12 = vector.broadcast %10 : vector<1x512xf32> to vector<16x512xf32>
    %13 = arith.mulf %11, %12 : vector<16x512xf32>
    %14 = arith.addf %8, %13 : vector<16x512xf32>
    %c0_8 = arith.constant 0 : index
    %c0_9 = arith.constant 0 : index
    %c0_10 = arith.constant 0 : index
    %15 = vector.load %arg7[%c0_8, %c0_9, %c0_10] : memref<1x16x2xf32, #tpu.memory_space<vmem>>, vector<1x16x2xf32>
    %16 = vector.shape_cast %15 : vector<1x16x2xf32> to vector<16x2xf32>
    %17 = vector.extract_strided_slice %16 {offsets = [0, 0], sizes = [16, 1], strides = [1, 1]} : vector<16x2xf32> to vector<16x1xf32>
    %c0_11 = arith.constant 0 : index
    %c0_12 = arith.constant 0 : index
    %18 = vector.load %arg13[%c0_11, %c0_12] : memref<2x512xf32, #tpu.memory_space<vmem>>, vector<1x512xf32>
    %19 = vector.broadcast %17 : vector<16x1xf32> to vector<16x512xf32>
    %20 = vector.broadcast %18 : vector<1x512xf32> to vector<16x512xf32>
    %21 = arith.mulf %19, %20 : vector<16x512xf32>
    %22 = vector.extract_strided_slice %16 {offsets = [0, 1], sizes = [16, 1], strides = [1, 1]} : vector<16x2xf32> to vector<16x1xf32>
    %c1_13 = arith.constant 1 : index
    %c0_14 = arith.constant 0 : index
    %23 = vector.load %arg13[%c1_13, %c0_14] : memref<2x512xf32, #tpu.memory_space<vmem>>, vector<1x512xf32>
    %24 = vector.broadcast %22 : vector<16x1xf32> to vector<16x512xf32>
    %25 = vector.broadcast %23 : vector<1x512xf32> to vector<16x512xf32>
    %26 = arith.mulf %24, %25 : vector<16x512xf32>
    %27 = arith.addf %21, %26 : vector<16x512xf32>
    %c17_i32 = arith.constant 17 : i32
    %28 = tpu.dynamic_rotate %1 by %c17_i32 dim 1 : vector<16x512xf32>, i32 -> vector<16x512xf32>
    %c0_15 = arith.constant 0 : index
    %c0_16 = arith.constant 0 : index
    %29 = vector.load %arg12[%c0_15, %c0_16] : memref<9x512xf32, #tpu.memory_space<vmem>>, vector<1x512xf32>
    %30 = vector.broadcast %29 : vector<1x512xf32> to vector<16x512xf32>
    %31 = arith.mulf %28, %30 : vector<16x512xf32>
    %32 = arith.truncf %31 : vector<16x512xf32> to vector<16x512xbf16>
    %c0_17 = arith.constant 0 : index
    %c0_18 = arith.constant 0 : index
    %33 = vector.load %arg15[%c0_17, %c0_18] : memref<144x512xbf16, #tpu.memory_space<vmem>>, vector<16x512xbf16>
    tpu.vector_store %arg15[%c0_17, %c0_18], %32 {strides = array<i32>} : memref<144x512xbf16, #tpu.memory_space<vmem>>, vector<16x512xbf16>,
    %c16_i32 = arith.constant 16 : i32
    %34 = tpu.dynamic_rotate %1 by %c16_i32 dim 1 : vector<16x512xf32>, i32 -> vector<16x512xf32>
    %c1_19 = arith.constant 1 : index
    %c0_20 = arith.constant 0 : index
    %35 = vector.load %arg12[%c1_19, %c0_20] : memref<9x512xf32, #tpu.memory_space<vmem>>, vector<1x512xf32>
    %36 = vector.broadcast %35 : vector<1x512xf32> to vector<16x512xf32>
    %37 = arith.mulf %34, %36 : vector<16x512xf32>
    %38 = arith.truncf %37 : vector<16x512xf32> to vector<16x512xbf16>
    %c16 = arith.constant 16 : index
    %c0_21 = arith.constant 0 : index
    %39 = vector.load %arg15[%c16, %c0_21] : memref<144x512xbf16, #tpu.memory_space<vmem>>, vector<16x512xbf16>
    tpu.vector_store %arg15[%c16, %c0_21], %38 {strides = array<i32>} : memref<144x512xbf16, #tpu.memory_space<vmem>>, vector<16x512xbf16>,
    %c15_i32 = arith.constant 15 : i32
    %40 = tpu.dynamic_rotate %1 by %c15_i32 dim 1 : vector<16x512xf32>, i32 -> vector<16x512xf32>
    %c2 = arith.constant 2 : index
    %c0_22 = arith.constant 0 : index
    %41 = vector.load %arg12[%c2, %c0_22] : memref<9x512xf32, #tpu.memory_space<vmem>>, vector<1x512xf32>
    %42 = vector.broadcast %41 : vector<1x512xf32> to vector<16x512xf32>
    %43 = arith.mulf %40, %42 : vector<16x512xf32>
    %44 = arith.truncf %43 : vector<16x512xf32> to vector<16x512xbf16>
    %c32 = arith.constant 32 : index
    %c0_23 = arith.constant 0 : index
    %45 = vector.load %arg15[%c32, %c0_23] : memref<144x512xbf16, #tpu.memory_space<vmem>>, vector<16x512xbf16>
    tpu.vector_store %arg15[%c32, %c0_23], %44 {strides = array<i32>} : memref<144x512xbf16, #tpu.memory_space<vmem>>, vector<16x512xbf16>,
    %c1_i32 = arith.constant 1 : i32
    %46 = tpu.dynamic_rotate %1 by %c1_i32 dim 1 : vector<16x512xf32>, i32 -> vector<16x512xf32>
    %c3 = arith.constant 3 : index
    %c0_24 = arith.constant 0 : index
    %47 = vector.load %arg12[%c3, %c0_24] : memref<9x512xf32, #tpu.memory_space<vmem>>, vector<1x512xf32>
    %48 = vector.broadcast %47 : vector<1x512xf32> to vector<16x512xf32>
    %49 = arith.mulf %46, %48 : vector<16x512xf32>
    %50 = arith.truncf %49 : vector<16x512xf32> to vector<16x512xbf16>
    %c48 = arith.constant 48 : index
    %c0_25 = arith.constant 0 : index
    %51 = vector.load %arg15[%c48, %c0_25] : memref<144x512xbf16, #tpu.memory_space<vmem>>, vector<16x512xbf16>
    tpu.vector_store %arg15[%c48, %c0_25], %50 {strides = array<i32>} : memref<144x512xbf16, #tpu.memory_space<vmem>>, vector<16x512xbf16>,
    %52 = arith.truncf %1 : vector<16x512xf32> to vector<16x512xbf16>
    %c64 = arith.constant 64 : index
    %c0_26 = arith.constant 0 : index
    %53 = vector.load %arg15[%c64, %c0_26] : memref<144x512xbf16, #tpu.memory_space<vmem>>, vector<16x512xbf16>
    tpu.vector_store %arg15[%c64, %c0_26], %52 {strides = array<i32>} : memref<144x512xbf16, #tpu.memory_space<vmem>>, vector<16x512xbf16>,
    %c511_i32 = arith.constant 511 : i32
    %54 = tpu.dynamic_rotate %1 by %c511_i32 dim 1 : vector<16x512xf32>, i32 -> vector<16x512xf32>
    %c5 = arith.constant 5 : index
    %c0_27 = arith.constant 0 : index
    %55 = vector.load %arg12[%c5, %c0_27] : memref<9x512xf32, #tpu.memory_space<vmem>>, vector<1x512xf32>
    %56 = vector.broadcast %55 : vector<1x512xf32> to vector<16x512xf32>
    %57 = arith.mulf %54, %56 : vector<16x512xf32>
    %58 = arith.truncf %57 : vector<16x512xf32> to vector<16x512xbf16>
    %c80 = arith.constant 80 : index
    %c0_28 = arith.constant 0 : index
    %59 = vector.load %arg15[%c80, %c0_28] : memref<144x512xbf16, #tpu.memory_space<vmem>>, vector<16x512xbf16>
    tpu.vector_store %arg15[%c80, %c0_28], %58 {strides = array<i32>} : memref<144x512xbf16, #tpu.memory_space<vmem>>, vector<16x512xbf16>,
    %c497_i32 = arith.constant 497 : i32
    %60 = tpu.dynamic_rotate %1 by %c497_i32 dim 1 : vector<16x512xf32>, i32 -> vector<16x512xf32>
    %c6 = arith.constant 6 : index
    %c0_29 = arith.constant 0 : index
    %61 = vector.load %arg12[%c6, %c0_29] : memref<9x512xf32, #tpu.memory_space<vmem>>, vector<1x512xf32>
    %62 = vector.broadcast %61 : vector<1x512xf32> to vector<16x512xf32>
    %63 = arith.mulf %60, %62 : vector<16x512xf32>
    %64 = arith.truncf %63 : vector<16x512xf32> to vector<16x512xbf16>
    %c96 = arith.constant 96 : index
    %c0_30 = arith.constant 0 : index
    %65 = vector.load %arg15[%c96, %c0_30] : memref<144x512xbf16, #tpu.memory_space<vmem>>, vector<16x512xbf16>
    tpu.vector_store %arg15[%c96, %c0_30], %64 {strides = array<i32>} : memref<144x512xbf16, #tpu.memory_space<vmem>>, vector<16x512xbf16>,
    %c496_i32 = arith.constant 496 : i32
    %66 = tpu.dynamic_rotate %1 by %c496_i32 dim 1 : vector<16x512xf32>, i32 -> vector<16x512xf32>
    %c7 = arith.constant 7 : index
    %c0_31 = arith.constant 0 : index
    %67 = vector.load %arg12[%c7, %c0_31] : memref<9x512xf32, #tpu.memory_space<vmem>>, vector<1x512xf32>
    %68 = vector.broadcast %67 : vector<1x512xf32> to vector<16x512xf32>
    %69 = arith.mulf %66, %68 : vector<16x512xf32>
    %70 = arith.truncf %69 : vector<16x512xf32> to vector<16x512xbf16>
    %c112 = arith.constant 112 : index
    %c0_32 = arith.constant 0 : index
    %71 = vector.load %arg15[%c112, %c0_32] : memref<144x512xbf16, #tpu.memory_space<vmem>>, vector<16x512xbf16>
    tpu.vector_store %arg15[%c112, %c0_32], %70 {strides = array<i32>} : memref<144x512xbf16, #tpu.memory_space<vmem>>, vector<16x512xbf16>,
    %c495_i32 = arith.constant 495 : i32
    %72 = tpu.dynamic_rotate %1 by %c495_i32 dim 1 : vector<16x512xf32>, i32 -> vector<16x512xf32>
    %c8 = arith.constant 8 : index
    %c0_33 = arith.constant 0 : index
    %73 = vector.load %arg12[%c8, %c0_33] : memref<9x512xf32, #tpu.memory_space<vmem>>, vector<1x512xf32>
    %74 = vector.broadcast %73 : vector<1x512xf32> to vector<16x512xf32>
    %75 = arith.mulf %72, %74 : vector<16x512xf32>
    %76 = arith.truncf %75 : vector<16x512xf32> to vector<16x512xbf16>
    %c128 = arith.constant 128 : index
    %c0_34 = arith.constant 0 : index
    %77 = vector.load %arg15[%c128, %c0_34] : memref<144x512xbf16, #tpu.memory_space<vmem>>, vector<16x512xbf16>
    tpu.vector_store %arg15[%c128, %c0_34], %76 {strides = array<i32>} : memref<144x512xbf16, #tpu.memory_space<vmem>>, vector<16x512xbf16>,
    %c0_35 = arith.constant 0 : index
    %c0_36 = arith.constant 0 : index
    %78 = vector.load %arg2[%c0_35, %c0_36] : memref<16x144xbf16, #tpu.memory_space<vmem>>, vector<16x144xbf16>
    %c0_37 = arith.constant 0 : index
    %c0_38 = arith.constant 0 : index
    %79 = vector.load %arg15[%c0_37, %c0_38] : memref<144x512xbf16, #tpu.memory_space<vmem>>, vector<144x512xbf16>
    %cst = arith.constant dense<0.000000e+00> : vector<16x512xf32>
    %80 = tpu.matmul %78, %79, %cst {dimension_numbers = #tpu.dot_dimension_numbers<[1], [0], [0], [1], [0, 0, 1, 1], [], []>} : vector<16x144xbf16>, vector<144x512xbf16>, vector<16x512xf32> -> vector<16x512xf32>
    %c0_39 = arith.constant 0 : index
    %c0_40 = arith.constant 0 : index
    %81 = vector.load %arg3[%c0_39, %c0_40] : memref<16x1xf32, #tpu.memory_space<vmem>>, vector<16x1xf32>
    %82 = vector.broadcast %81 : vector<16x1xf32> to vector<16x512xf32>
    %83 = arith.addf %80, %82 : vector<16x512xf32>
    %84 = arith.mulf %83, %27 : vector<16x512xf32>
    %85 = arith.mulf %1, %14 : vector<16x512xf32>
    %86 = arith.addf %84, %85 : vector<16x512xf32>
    %cst_41 = arith.constant 0.000000e+00 : f32
    %87 = vector.broadcast %cst_41 : f32 to vector<16x512xf32>
    %88 = arith.maximumf %86, %87 : vector<16x512xf32>
    %c17_i32_42 = arith.constant 17 : i32
    %89 = tpu.dynamic_rotate %88 by %c17_i32_42 dim 1 : vector<16x512xf32>, i32 -> vector<16x512xf32>
    %c0_43 = arith.constant 0 : index
    %c0_44 = arith.constant 0 : index
    %90 = vector.load %arg12[%c0_43, %c0_44] : memref<9x512xf32, #tpu.memory_space<vmem>>, vector<1x512xf32>
    %91 = vector.broadcast %90 : vector<1x512xf32> to vector<16x512xf32>
    %92 = arith.mulf %89, %91 : vector<16x512xf32>
    %93 = arith.truncf %92 : vector<16x512xf32> to vector<16x512xbf16>
    %c0_45 = arith.constant 0 : index
    %c0_46 = arith.constant 0 : index
    %94 = vector.load %arg15[%c0_45, %c0_46] : memref<144x512xbf16, #tpu.memory_space<vmem>>, vector<16x512xbf16>
    tpu.vector_store %arg15[%c0_45, %c0_46], %93 {strides = array<i32>} : memref<144x512xbf16, #tpu.memory_space<vmem>>, vector<16x512xbf16>,
    %c16_i32_47 = arith.constant 16 : i32
    %95 = tpu.dynamic_rotate %88 by %c16_i32_47 dim 1 : vector<16x512xf32>, i32 -> vector<16x512xf32>
    %c1_48 = arith.constant 1 : index
    %c0_49 = arith.constant 0 : index
    %96 = vector.load %arg12[%c1_48, %c0_49] : memref<9x512xf32, #tpu.memory_space<vmem>>, vector<1x512xf32>
    %97 = vector.broadcast %96 : vector<1x512xf32> to vector<16x512xf32>
    %98 = arith.mulf %95, %97 : vector<16x512xf32>
    %99 = arith.truncf %98 : vector<16x512xf32> to vector<16x512xbf16>
    %c16_50 = arith.constant 16 : index
    %c0_51 = arith.constant 0 : index
    %100 = vector.load %arg15[%c16_50, %c0_51] : memref<144x512xbf16, #tpu.memory_space<vmem>>, vector<16x512xbf16>
    tpu.vector_store %arg15[%c16_50, %c0_51], %99 {strides = array<i32>} : memref<144x512xbf16, #tpu.memory_space<vmem>>, vector<16x512xbf16>,
    %c15_i32_52 = arith.constant 15 : i32
    %101 = tpu.dynamic_rotate %88 by %c15_i32_52 dim 1 : vector<16x512xf32>, i32 -> vector<16x512xf32>
    %c2_53 = arith.constant 2 : index
    %c0_54 = arith.constant 0 : index
    %102 = vector.load %arg12[%c2_53, %c0_54] : memref<9x512xf32, #tpu.memory_space<vmem>>, vector<1x512xf32>
    %103 = vector.broadcast %102 : vector<1x512xf32> to vector<16x512xf32>
    %104 = arith.mulf %101, %103 : vector<16x512xf32>
    %105 = arith.truncf %104 : vector<16x512xf32> to vector<16x512xbf16>
    %c32_55 = arith.constant 32 : index
    %c0_56 = arith.constant 0 : index
    %106 = vector.load %arg15[%c32_55, %c0_56] : memref<144x512xbf16, #tpu.memory_space<vmem>>, vector<16x512xbf16>
    tpu.vector_store %arg15[%c32_55, %c0_56], %105 {strides = array<i32>} : memref<144x512xbf16, #tpu.memory_space<vmem>>, vector<16x512xbf16>,
    %c1_i32_57 = arith.constant 1 : i32
    %107 = tpu.dynamic_rotate %88 by %c1_i32_57 dim 1 : vector<16x512xf32>, i32 -> vector<16x512xf32>
    %c3_58 = arith.constant 3 : index
    %c0_59 = arith.constant 0 : index
    %108 = vector.load %arg12[%c3_58, %c0_59] : memref<9x512xf32, #tpu.memory_space<vmem>>, vector<1x512xf32>
    %109 = vector.broadcast %108 : vector<1x512xf32> to vector<16x512xf32>
    %110 = arith.mulf %107, %109 : vector<16x512xf32>
    %111 = arith.truncf %110 : vector<16x512xf32> to vector<16x512xbf16>
    %c48_60 = arith.constant 48 : index
    %c0_61 = arith.constant 0 : index
    %112 = vector.load %arg15[%c48_60, %c0_61] : memref<144x512xbf16, #tpu.memory_space<vmem>>, vector<16x512xbf16>
    tpu.vector_store %arg15[%c48_60, %c0_61], %111 {strides = array<i32>} : memref<144x512xbf16, #tpu.memory_space<vmem>>, vector<16x512xbf16>,
    %113 = arith.truncf %88 : vector<16x512xf32> to vector<16x512xbf16>
    %c64_62 = arith.constant 64 : index
    %c0_63 = arith.constant 0 : index
    %114 = vector.load %arg15[%c64_62, %c0_63] : memref<144x512xbf16, #tpu.memory_space<vmem>>, vector<16x512xbf16>
    tpu.vector_store %arg15[%c64_62, %c0_63], %113 {strides = array<i32>} : memref<144x512xbf16, #tpu.memory_space<vmem>>, vector<16x512xbf16>,
    %c511_i32_64 = arith.constant 511 : i32
    %115 = tpu.dynamic_rotate %88 by %c511_i32_64 dim 1 : vector<16x512xf32>, i32 -> vector<16x512xf32>
    %c5_65 = arith.constant 5 : index
    %c0_66 = arith.constant 0 : index
    %116 = vector.load %arg12[%c5_65, %c0_66] : memref<9x512xf32, #tpu.memory_space<vmem>>, vector<1x512xf32>
    %117 = vector.broadcast %116 : vector<1x512xf32> to vector<16x512xf32>
    %118 = arith.mulf %115, %117 : vector<16x512xf32>
    %119 = arith.truncf %118 : vector<16x512xf32> to vector<16x512xbf16>
    %c80_67 = arith.constant 80 : index
    %c0_68 = arith.constant 0 : index
    %120 = vector.load %arg15[%c80_67, %c0_68] : memref<144x512xbf16, #tpu.memory_space<vmem>>, vector<16x512xbf16>
    tpu.vector_store %arg15[%c80_67, %c0_68], %119 {strides = array<i32>} : memref<144x512xbf16, #tpu.memory_space<vmem>>, vector<16x512xbf16>,
    %c497_i32_69 = arith.constant 497 : i32
    %121 = tpu.dynamic_rotate %88 by %c497_i32_69 dim 1 : vector<16x512xf32>, i32 -> vector<16x512xf32>
    %c6_70 = arith.constant 6 : index
    %c0_71 = arith.constant 0 : index
    %122 = vector.load %arg12[%c6_70, %c0_71] : memref<9x512xf32, #tpu.memory_space<vmem>>, vector<1x512xf32>
    %123 = vector.broadcast %122 : vector<1x512xf32> to vector<16x512xf32>
    %124 = arith.mulf %121, %123 : vector<16x512xf32>
    %125 = arith.truncf %124 : vector<16x512xf32> to vector<16x512xbf16>
    %c96_72 = arith.constant 96 : index
    %c0_73 = arith.constant 0 : index
    %126 = vector.load %arg15[%c96_72, %c0_73] : memref<144x512xbf16, #tpu.memory_space<vmem>>, vector<16x512xbf16>
    tpu.vector_store %arg15[%c96_72, %c0_73], %125 {strides = array<i32>} : memref<144x512xbf16, #tpu.memory_space<vmem>>, vector<16x512xbf16>,
    %c496_i32_74 = arith.constant 496 : i32
    %127 = tpu.dynamic_rotate %88 by %c496_i32_74 dim 1 : vector<16x512xf32>, i32 -> vector<16x512xf32>
    %c7_75 = arith.constant 7 : index
    %c0_76 = arith.constant 0 : index
    %128 = vector.load %arg12[%c7_75, %c0_76] : memref<9x512xf32, #tpu.memory_space<vmem>>, vector<1x512xf32>
    %129 = vector.broadcast %128 : vector<1x512xf32> to vector<16x512xf32>
    %130 = arith.mulf %127, %129 : vector<16x512xf32>
    %131 = arith.truncf %130 : vector<16x512xf32> to vector<16x512xbf16>
    %c112_77 = arith.constant 112 : index
    %c0_78 = arith.constant 0 : index
    %132 = vector.load %arg15[%c112_77, %c0_78] : memref<144x512xbf16, #tpu.memory_space<vmem>>, vector<16x512xbf16>
    tpu.vector_store %arg15[%c112_77, %c0_78], %131 {strides = array<i32>} : memref<144x512xbf16, #tpu.memory_space<vmem>>, vector<16x512xbf16>,
    %c495_i32_79 = arith.constant 495 : i32
    %133 = tpu.dynamic_rotate %88 by %c495_i32_79 dim 1 : vector<16x512xf32>, i32 -> vector<16x512xf32>
    %c8_80 = arith.constant 8 : index
    %c0_81 = arith.constant 0 : index
    %134 = vector.load %arg12[%c8_80, %c0_81] : memref<9x512xf32, #tpu.memory_space<vmem>>, vector<1x512xf32>
    %135 = vector.broadcast %134 : vector<1x512xf32> to vector<16x512xf32>
    %136 = arith.mulf %133, %135 : vector<16x512xf32>
    %137 = arith.truncf %136 : vector<16x512xf32> to vector<16x512xbf16>
    %c128_82 = arith.constant 128 : index
    %c0_83 = arith.constant 0 : index
    %138 = vector.load %arg15[%c128_82, %c0_83] : memref<144x512xbf16, #tpu.memory_space<vmem>>, vector<16x512xbf16>
    tpu.vector_store %arg15[%c128_82, %c0_83], %137 {strides = array<i32>} : memref<144x512xbf16, #tpu.memory_space<vmem>>, vector<16x512xbf16>,
    %c0_84 = arith.constant 0 : index
    %c0_85 = arith.constant 0 : index
    %139 = vector.load %arg4[%c0_84, %c0_85] : memref<16x144xbf16, #tpu.memory_space<vmem>>, vector<16x144xbf16>
    %c0_86 = arith.constant 0 : index
    %c0_87 = arith.constant 0 : index
    %140 = vector.load %arg15[%c0_86, %c0_87] : memref<144x512xbf16, #tpu.memory_space<vmem>>, vector<144x512xbf16>
    %cst_88 = arith.constant dense<0.000000e+00> : vector<16x512xf32>
    %141 = tpu.matmul %139, %140, %cst_88 {dimension_numbers = #tpu.dot_dimension_numbers<[1], [0], [0], [1], [0, 0, 1, 1], [], []>} : vector<16x144xbf16>, vector<144x512xbf16>, vector<16x512xf32> -> vector<16x512xf32>
    %c0_89 = arith.constant 0 : index
    %c0_90 = arith.constant 0 : index
    %142 = vector.load %arg5[%c0_89, %c0_90] : memref<16x1xf32, #tpu.memory_space<vmem>>, vector<16x1xf32>
    %143 = vector.broadcast %142 : vector<16x1xf32> to vector<16x512xf32>
    %144 = arith.addf %141, %143 : vector<16x512xf32>
    %145 = arith.mulf %144, %27 : vector<16x512xf32>
    %146 = arith.mulf %88, %14 : vector<16x512xf32>
    %147 = arith.addf %145, %146 : vector<16x512xf32>
    %c0_91 = arith.constant 0 : index
    %c0_92 = arith.constant 0 : index
    %148 = vector.load %arg13[%c0_91, %c0_92] : memref<2x512xf32, #tpu.memory_space<vmem>>, vector<1x512xf32>
    %149 = vector.broadcast %148 : vector<1x512xf32> to vector<16x512xf32>
    %150 = arith.mulf %147, %149 : vector<16x512xf32>
    %cst_93 = arith.constant dense<0.000000e+00> : vector<16xf32>
    %151 = vector.multi_reduction <add>, %150, %cst_93 [1] : vector<16x512xf32> to vector<16xf32>
    %152 = vector.shape_cast %151 : vector<16xf32> to vector<16x1xf32>
    %cst_94 = arith.constant 3.906250e-03 : f32
    %153 = vector.broadcast %cst_94 : f32 to vector<16x1xf32>
    %154 = arith.mulf %152, %153 : vector<16x1xf32>
    %c0_95 = arith.constant 0 : index
    %c0_96 = arith.constant 0 : index
    %155 = vector.load %arg8[%c0_95, %c0_96] : memref<16x4xf32, #tpu.memory_space<vmem>>, vector<16x4xf32>
    %156 = vector.broadcast %154 : vector<16x1xf32> to vector<16x4xf32>
    %157 = arith.mulf %155, %156 : vector<16x4xf32>
    %cst_97 = arith.constant dense<0.000000e+00> : vector<4xf32>
    %158 = vector.multi_reduction <add>, %157, %cst_97 [0] : vector<16x4xf32> to vector<4xf32>
    %159 = vector.shape_cast %158 : vector<4xf32> to vector<1x4xf32>
    %c0_98 = arith.constant 0 : index
    %c0_99 = arith.constant 0 : index
    %160 = vector.load %arg9[%c0_98, %c0_99] : memref<1x4xf32, #tpu.memory_space<vmem>>, vector<1x4xf32>
    %161 = arith.addf %159, %160 : vector<1x4xf32>
    %cst_100 = arith.constant 0.000000e+00 : f32
    %162 = vector.broadcast %cst_100 : f32 to vector<1x4xf32>
    %163 = arith.maximumf %161, %162 : vector<1x4xf32>
    %c0_101 = arith.constant 0 : index
    %c0_102 = arith.constant 0 : index
    %164 = vector.load %arg10[%c0_101, %c0_102] : memref<16x4xf32, #tpu.memory_space<vmem>>, vector<16x4xf32>
    %165 = vector.broadcast %163 : vector<1x4xf32> to vector<16x4xf32>
    %166 = arith.mulf %164, %165 : vector<16x4xf32>
    %cst_103 = arith.constant dense<0.000000e+00> : vector<16xf32>
    %167 = vector.multi_reduction <add>, %166, %cst_103 [1] : vector<16x4xf32> to vector<16xf32>
    %168 = vector.shape_cast %167 : vector<16xf32> to vector<16x1xf32>
    %c0_104 = arith.constant 0 : index
    %c0_105 = arith.constant 0 : index
    %169 = vector.load %arg11[%c0_104, %c0_105] : memref<16x1xf32, #tpu.memory_space<vmem>>, vector<16x1xf32>
    %170 = arith.addf %168, %169 : vector<16x1xf32>
    %171 = arith.negf %170 : vector<16x1xf32>
    %172 = math.exp %171 : vector<16x1xf32>
    %cst_106 = arith.constant 1.000000e+00 : f32
    %173 = vector.broadcast %cst_106 : f32 to vector<16x1xf32>
    %174 = arith.addf %173, %172 : vector<16x1xf32>
    %175 = arith.divf %173, %174 : vector<16x1xf32>
    %c1_107 = arith.constant 1 : index
    %c0_108 = arith.constant 0 : index
    %176 = vector.load %arg13[%c1_107, %c0_108] : memref<2x512xf32, #tpu.memory_space<vmem>>, vector<1x512xf32>
    %177 = vector.broadcast %176 : vector<1x512xf32> to vector<16x512xf32>
    %178 = arith.mulf %147, %177 : vector<16x512xf32>
    %cst_109 = arith.constant dense<0.000000e+00> : vector<16xf32>
    %179 = vector.multi_reduction <add>, %178, %cst_109 [1] : vector<16x512xf32> to vector<16xf32>
    %180 = vector.shape_cast %179 : vector<16xf32> to vector<16x1xf32>
    %cst_110 = arith.constant 3.906250e-03 : f32
    %181 = vector.broadcast %cst_110 : f32 to vector<16x1xf32>
    %182 = arith.mulf %180, %181 : vector<16x1xf32>
    %c0_111 = arith.constant 0 : index
    %c0_112 = arith.constant 0 : index
    %183 = vector.load %arg8[%c0_111, %c0_112] : memref<16x4xf32, #tpu.memory_space<vmem>>, vector<16x4xf32>
    %184 = vector.broadcast %182 : vector<16x1xf32> to vector<16x4xf32>
    %185 = arith.mulf %183, %184 : vector<16x4xf32>
    %cst_113 = arith.constant dense<0.000000e+00> : vector<4xf32>
    %186 = vector.multi_reduction <add>, %185, %cst_113 [0] : vector<16x4xf32> to vector<4xf32>
    %187 = vector.shape_cast %186 : vector<4xf32> to vector<1x4xf32>
    %c0_114 = arith.constant 0 : index
    %c0_115 = arith.constant 0 : index
    %188 = vector.load %arg9[%c0_114, %c0_115] : memref<1x4xf32, #tpu.memory_space<vmem>>, vector<1x4xf32>
    %189 = arith.addf %187, %188 : vector<1x4xf32>
    %cst_116 = arith.constant 0.000000e+00 : f32
    %190 = vector.broadcast %cst_116 : f32 to vector<1x4xf32>
    %191 = arith.maximumf %189, %190 : vector<1x4xf32>
    %c0_117 = arith.constant 0 : index
    %c0_118 = arith.constant 0 : index
    %192 = vector.load %arg10[%c0_117, %c0_118] : memref<16x4xf32, #tpu.memory_space<vmem>>, vector<16x4xf32>
    %193 = vector.broadcast %191 : vector<1x4xf32> to vector<16x4xf32>
    %194 = arith.mulf %192, %193 : vector<16x4xf32>
    %cst_119 = arith.constant dense<0.000000e+00> : vector<16xf32>
    %195 = vector.multi_reduction <add>, %194, %cst_119 [1] : vector<16x4xf32> to vector<16xf32>
    %196 = vector.shape_cast %195 : vector<16xf32> to vector<16x1xf32>
    %c0_120 = arith.constant 0 : index
    %c0_121 = arith.constant 0 : index
    %197 = vector.load %arg11[%c0_120, %c0_121] : memref<16x1xf32, #tpu.memory_space<vmem>>, vector<16x1xf32>
    %198 = arith.addf %196, %197 : vector<16x1xf32>
    %199 = arith.negf %198 : vector<16x1xf32>
    %200 = math.exp %199 : vector<16x1xf32>
    %cst_122 = arith.constant 1.000000e+00 : f32
    %201 = vector.broadcast %cst_122 : f32 to vector<16x1xf32>
    %202 = arith.addf %201, %200 : vector<16x1xf32>
    %203 = arith.divf %201, %202 : vector<16x1xf32>
    %c0_123 = arith.constant 0 : index
    %c0_124 = arith.constant 0 : index
    %204 = vector.load %arg13[%c0_123, %c0_124] : memref<2x512xf32, #tpu.memory_space<vmem>>, vector<1x512xf32>
    %205 = vector.broadcast %175 : vector<16x1xf32> to vector<16x512xf32>
    %206 = vector.broadcast %204 : vector<1x512xf32> to vector<16x512xf32>
    %207 = arith.mulf %205, %206 : vector<16x512xf32>
    %c1_125 = arith.constant 1 : index
    %c0_126 = arith.constant 0 : index
    %208 = vector.load %arg13[%c1_125, %c0_126] : memref<2x512xf32, #tpu.memory_space<vmem>>, vector<1x512xf32>
    %209 = vector.broadcast %203 : vector<16x1xf32> to vector<16x512xf32>
    %210 = vector.broadcast %208 : vector<1x512xf32> to vector<16x512xf32>
    %211 = arith.mulf %209, %210 : vector<16x512xf32>
    %212 = arith.addf %207, %211 : vector<16x512xf32>
    %213 = arith.mulf %147, %212 : vector<16x512xf32>
    %214 = arith.addf %213, %1 : vector<16x512xf32>
    %215 = vector.shape_cast %214 : vector<16x512xf32> to vector<1x16x512xf32>
    %c0_127 = arith.constant 0 : index
    %c0_128 = arith.constant 0 : index
    %c0_129 = arith.constant 0 : index
    %216 = vector.load %arg14[%c0_127, %c0_128, %c0_129] : memref<1x16x512xf32, #tpu.memory_space<vmem>>, vector<1x16x512xf32>
    tpu.vector_store %arg14[%c0_127, %c0_128, %c0_129], %215 {strides = array<i32>} : memref<1x16x512xf32, #tpu.memory_space<vmem>>, vector<1x16x512xf32>,
    return
  }
  func.func @transform_0(%arg0: i32) -> (i32, i32, i32) {
    %c0_i32 = arith.constant 0 : i32
    %c0_i32_0 = arith.constant 0 : i32
    %c0_i32_1 = arith.constant 0 : i32
    return %arg0, %c0_i32, %c0_i32_0 : i32, i32, i32
  }
  func.func @transform_1(%arg0: i32) -> (i32, i32) {
    %c0_i32 = arith.constant 0 : i32
    %c0_i32_0 = arith.constant 0 : i32
    %c0_i32_1 = arith.constant 0 : i32
    return %c0_i32, %c0_i32_0 : i32, i32
  }
  func.func @transform_2(%arg0: i32) -> (i32, i32) {
    %c0_i32 = arith.constant 0 : i32
    %c0_i32_0 = arith.constant 0 : i32
    %c0_i32_1 = arith.constant 0 : i32
    return %c0_i32, %c0_i32_0 : i32, i32
  }
  func.func @transform_3(%arg0: i32) -> (i32, i32) {
    %c0_i32 = arith.constant 0 : i32
    %c0_i32_0 = arith.constant 0 : i32
    %c0_i32_1 = arith.constant 0 : i32
    return %c0_i32, %c0_i32_0 : i32, i32
  }
  func.func @transform_4(%arg0: i32) -> (i32, i32) {
    %c0_i32 = arith.constant 0 : i32
    %c0_i32_0 = arith.constant 0 : i32
    %c0_i32_1 = arith.constant 0 : i32
    return %c0_i32, %c0_i32_0 : i32, i32
  }
  func.func @transform_5(%arg0: i32) -> (i32, i32, i32) {
    %c0_i32 = arith.constant 0 : i32
    %c0_i32_0 = arith.constant 0 : i32
    %c0_i32_1 = arith.constant 0 : i32
    return %arg0, %c0_i32, %c0_i32_0 : i32, i32, i32
  }
  func.func @transform_6(%arg0: i32) -> (i32, i32, i32) {
    %c0_i32 = arith.constant 0 : i32
    %c0_i32_0 = arith.constant 0 : i32
    %c0_i32_1 = arith.constant 0 : i32
    return %arg0, %c0_i32, %c0_i32_0 : i32, i32, i32
  }
  func.func @transform_7(%arg0: i32) -> (i32, i32) {
    %c0_i32 = arith.constant 0 : i32
    %c0_i32_0 = arith.constant 0 : i32
    %c0_i32_1 = arith.constant 0 : i32
    return %c0_i32, %c0_i32_0 : i32, i32
  }
  func.func @transform_8(%arg0: i32) -> (i32, i32) {
    %c0_i32 = arith.constant 0 : i32
    %c0_i32_0 = arith.constant 0 : i32
    %c0_i32_1 = arith.constant 0 : i32
    return %c0_i32, %c0_i32_0 : i32, i32
  }
  func.func @transform_9(%arg0: i32) -> (i32, i32) {
    %c0_i32 = arith.constant 0 : i32
    %c0_i32_0 = arith.constant 0 : i32
    %c0_i32_1 = arith.constant 0 : i32
    return %c0_i32, %c0_i32_0 : i32, i32
  }
  func.func @transform_10(%arg0: i32) -> (i32, i32) {
    %c0_i32 = arith.constant 0 : i32
    %c0_i32_0 = arith.constant 0 : i32
    %c0_i32_1 = arith.constant 0 : i32
    return %c0_i32, %c0_i32_0 : i32, i32
  }
  func.func @transform_11(%arg0: i32) -> (i32, i32) {
    %c0_i32 = arith.constant 0 : i32
    %c0_i32_0 = arith.constant 0 : i32
    %c0_i32_1 = arith.constant 0 : i32
    return %c0_i32, %c0_i32_0 : i32, i32
  }
  func.func @transform_12(%arg0: i32) -> (i32, i32) {
    %c0_i32 = arith.constant 0 : i32
    %c0_i32_0 = arith.constant 0 : i32
    %c0_i32_1 = arith.constant 0 : i32
    return %c0_i32, %c0_i32_0 : i32, i32
  }
  func.func @transform_13(%arg0: i32) -> (i32, i32, i32) {
    %c0_i32 = arith.constant 0 : i32
    %c0_i32_0 = arith.constant 0 : i32
    %c0_i32_1 = arith.constant 0 : i32
    return %arg0, %c0_i32, %c0_i32_0 : i32, i32, i32
  }
}

</mosaic_0001>

<llo_original>
// kernel: tpu_custom_call.1
$region0: #{tpu_custom_call.1}
  #allocation0 [shape = 'u32[]', space=smem, size = 0x4, offset = 0x4, fixed_abs, tag = 'smem constant byte address 0x4 - core index']
  #allocation1 [shape = 'u32[144,128]{1,0:T(1,128)}', space=vmem, size = 0x12000, scoped, tag = 'internal scratch']
  #allocation2 [shape = 'bf16[144,512]{1,0:T(16,128)(2,1)}', space=vmem, size = 0x24000, scoped, tag = 'scratch operand']
  %s0 = inlined_call_operand.vmem [shape: f32[2,16,512], index: 0, kind: input, shape index: {}]
  %s1 = inlined_call_operand.hbm [shape: bf16[16,144], index: 1, kind: input, shape index: {}]
  %s2 = inlined_call_operand.vmem [shape: f32[16,1], index: 2, kind: input, shape index: {}]
  %s3 = inlined_call_operand.hbm [shape: bf16[16,144], index: 3, kind: input, shape index: {}]
  %s4 = inlined_call_operand.vmem [shape: f32[16,1], index: 4, kind: input, shape index: {}]
  %s5 = inlined_call_operand.vmem [shape: f32[2,16,2], index: 5, kind: input, shape index: {}]
  %s6 = inlined_call_operand.vmem [shape: f32[2,16,2], index: 6, kind: input, shape index: {}]
  %s7 = inlined_call_operand.vmem [shape: f32[16,4], index: 7, kind: input, shape index: {}]
  %s8 = inlined_call_operand.hbm [shape: f32[1,4], index: 8, kind: input, shape index: {}]
  %s9 = inlined_call_operand.vmem [shape: f32[16,4], index: 9, kind: input, shape index: {}]
  %s10 = inlined_call_operand.vmem [shape: f32[16,1], index: 10, kind: input, shape index: {}]
  %s11 = inlined_call_operand.vmem [shape: f32[9,512], index: 11, kind: input, shape index: {}]
  %s12 = inlined_call_operand.vmem [shape: f32[2,512], index: 12, kind: input, shape index: {}]
  %s13 = inlined_call_operand.hbm [shape: f32[2,16,512], index: 13, kind: output, shape index: {}]
  %s14 = sld [smem:[#allocation0]]
  $region97: #{tpu_custom_call.1} parent=0
    _
  %s16 = ssub.s32 1, %s14
  %s17 = scalar_select 0, %s16, %s14
  $region1: #{tpu_custom_call.1} parent=0
    #allocation3 [shape = 'u8[8192]{0}', space=vmem, size = 0x2000, scoped, tag = 'input window, operand 1, single buffered']
    #allocation4 [shape = 's32[2]{0}', space=sflag, size = 0x8, scoped, tag = 'scoped memory for tpu_custom_call.1']
    #allocation5 [shape = 's32[2]{0}', space=sflag, size = 0x8, scoped, tag = 'scoped memory for tpu_custom_call.1']
    #allocation6 [shape = 'u8[8192]{0}', space=vmem, size = 0x2000, scoped, tag = 'input window, operand 3, single buffered']
    #allocation7 [shape = 's32[1]{0}', space=sflag, size = 0x4, scoped, tag = 'scoped memory for tpu_custom_call.1']
    #allocation8 [shape = 'u8[512]{0}', space=vmem, size = 0x400, scoped, tag = 'input window, operand 8, single buffered']
    #allocation9 [shape = 'u8[65536]{0}', space=vmem, size = 0x10000, scoped, tag = 'output window, operand 0']
    %18 = vsyncpa [#allocation4], 0
    %19 = vsyncpa [#allocation7], 0
    %20 = vsyncpa [#allocation5], 0
    %s21 = scalar_lea.sflag [#allocation5], 1
    %22 = vsyncpa %s21, 0
    loop: start=0, step=1, limit=4
    $region2: #{tpu_custom_call.1} parent=1 // loop_pre_header
      _
    $region3: #{tpu_custom_call.1} parent=1 // loop_header
      %s24 = sphi 0, %s28
      %p25 = scmp.ge.s32.totalorder %s24, 4
      %s34 = sphi 0, %s36
      %s37 = sphi 0, %s34
      %s38 = sphi 0, %s37
      %s54 = sphi 0, %s38
      %s58 = sphi 0, %s58
      %s60 = sphi 0, %s58
      %s61 = sphi 0, %s60
      %s75 = sphi 0, %s61
      %s79 = sphi 0, %s79
      %s81 = sphi 0, %s79
      %s82 = sphi 0, %s81
      %s96 = sphi 0, %s82
      %s100 = sphi 0, %s100
      %s102 = sphi 0, %s100
      %s103 = sphi 0, %s102
      %s117 = sphi 0, %s103
      %s121 = sphi 0, %s121
      %s123 = sphi 0, %s121
      %s124 = sphi 0, %s123
      %s138 = sphi 0, %s124
      %s144 = sphi 0, %s146
      %s147 = sphi 0, %s144
      %s148 = sphi 0, %s147
      %s164 = sphi 0, %s148
      %s170 = sphi 0, %s172
      %s173 = sphi 0, %s170
      %s174 = sphi 0, %s173
      %s190 = sphi 0, %s174
      %s194 = sphi 0, %s194
      %s196 = sphi 0, %s194
      %s197 = sphi 0, %s196
      %s211 = sphi 0, %s197
      %s215 = sphi 0, %s215
      %s217 = sphi 0, %s215
      %s218 = sphi 0, %s217
      %s232 = sphi 0, %s218
      %s236 = sphi 0, %s236
      %s238 = sphi 0, %s236
      %s239 = sphi 0, %s238
      %s253 = sphi 0, %s239
      %s257 = sphi 0, %s257
      %s259 = sphi 0, %s257
      %s260 = sphi 0, %s259
      %s274 = sphi 0, %s260
      %s278 = sphi 0, %s278
      %s280 = sphi 0, %s278
      %s281 = sphi 0, %s280
      %s295 = sphi 0, %s281
      %s299 = sphi 0, %s299
      %s301 = sphi 0, %s299
      %s302 = sphi 0, %s301
      %s316 = sphi 0, %s302
      %s322 = sphi 0, %s324
      %s325 = sphi 0, %s322
      %s326 = sphi 0, %s325
      %s342 = sphi 0, %s326
    $region4: #{tpu_custom_call.1} parent=1 // loop_header_branch
      %27 = sbr.rel (%p25) target = $region8
    $region5: #{tpu_custom_call.1} parent=1 // loop_body
      %s29 = ssub.s32 %s24, 1
      %s30 = ssub.s32 %s24, 2
      %s31 = sadd.s32 %s24, 1
      %s32 = ssub.s32 %s24, %s31
      %p33 = scmp.eq.s32.totalorder %s32, 0
      %s35 = sadd.s32 %s34, 1
      %s36 = scalar_select %p33, %s34, %s35
      %p39 = pneg %p33
      %p40 = scmp.eq.s32.totalorder %s24, 1
      %p41 = por %p39, %p40
      %p42 = scmp.ne.s32.totalorder %s34, %s37
      %p43 = scmp.eq.s32.totalorder %s24, 0
      %p44 = por %p42, %p43
      %p45 = scmp.ne.s32.totalorder %s34, %s37
      %p46 = scmp.eq.s32.totalorder %s29, 1
      %p47 = por %p45, %p46
      %p48 = scmp.ne.s32.totalorder %s37, %s38
      %p49 = scmp.eq.s32.totalorder %s29, 0
      %p50 = por %p48, %p49
      %p51 = scmp.ne.s32.totalorder %s37, %s38
      %p52 = scmp.eq.s32.totalorder %s30, 1
      %p53 = por %p51, %p52
      %p55 = scmp.ne.s32.totalorder %s38, %s54
      %p56 = scmp.eq.s32.totalorder %s30, 0
      %p57 = por %p55, %p56
      %s59 = sadd.s32 %s58, 1
      %p62 = scmp.eq.s32.totalorder %s24, 1
      %p63 = scmp.ne.s32.totalorder %s58, %s60
      %p64 = scmp.eq.s32.totalorder %s24, 0
      %p65 = por %p63, %p64
      %p66 = scmp.ne.s32.totalorder %s58, %s60
      %p67 = scmp.eq.s32.totalorder %s29, 1
      %p68 = por %p66, %p67
      %p69 = scmp.ne.s32.totalorder %s60, %s61
      %p70 = scmp.eq.s32.totalorder %s29, 0
      %p71 = por %p69, %p70
      %p72 = scmp.ne.s32.totalorder %s60, %s61
      %p73 = scmp.eq.s32.totalorder %s30, 1
      %p74 = por %p72, %p73
      %p76 = scmp.ne.s32.totalorder %s61, %s75
      %p77 = scmp.eq.s32.totalorder %s30, 0
      %p78 = por %p76, %p77
      %s80 = sadd.s32 %s79, 1
      %p83 = scmp.eq.s32.totalorder %s24, 1
      %p84 = scmp.ne.s32.totalorder %s79, %s81
      %p85 = scmp.eq.s32.totalorder %s24, 0
      %p86 = por %p84, %p85
      %p87 = scmp.ne.s32.totalorder %s79, %s81
      %p88 = scmp.eq.s32.totalorder %s29, 1
      %p89 = por %p87, %p88
      %p90 = scmp.ne.s32.totalorder %s81, %s82
      %p91 = scmp.eq.s32.totalorder %s29, 0
      %p92 = por %p90, %p91
      %p93 = scmp.ne.s32.totalorder %s81, %s82
      %p94 = scmp.eq.s32.totalorder %s30, 1
      %p95 = por %p93, %p94
      %p97 = scmp.ne.s32.totalorder %s82, %s96
      %p98 = scmp.eq.s32.totalorder %s30, 0
      %p99 = por %p97, %p98
      %s101 = sadd.s32 %s100, 1
      %p104 = scmp.eq.s32.totalorder %s24, 1
      %p105 = scmp.ne.s32.totalorder %s100, %s102
      %p106 = scmp.eq.s32.totalorder %s24, 0
      %p107 = por %p105, %p106
      %p108 = scmp.ne.s32.totalorder %s100, %s102
      %p109 = scmp.eq.s32.totalorder %s29, 1
      %p110 = por %p108, %p109
      %p111 = scmp.ne.s32.totalorder %s102, %s103
      %p112 = scmp.eq.s32.totalorder %s29, 0
      %p113 = por %p111, %p112
      %p114 = scmp.ne.s32.totalorder %s102, %s103
      %p115 = scmp.eq.s32.totalorder %s30, 1
      %p116 = por %p114, %p115
      %p118 = scmp.ne.s32.totalorder %s103, %s117
      %p119 = scmp.eq.s32.totalorder %s30, 0
      %p120 = por %p118, %p119
      %s122 = sadd.s32 %s121, 1
      %p125 = scmp.eq.s32.totalorder %s24, 1
      %p126 = scmp.ne.s32.totalorder %s121, %s123
      %p127 = scmp.eq.s32.totalorder %s24, 0
      %p128 = por %p126, %p127
      %p129 = scmp.ne.s32.totalorder %s121, %s123
      %p130 = scmp.eq.s32.totalorder %s29, 1
      %p131 = por %p129, %p130
      %p132 = scmp.ne.s32.totalorder %s123, %s124
      %p133 = scmp.eq.s32.totalorder %s29, 0
      %p134 = por %p132, %p133
      %p135 = scmp.ne.s32.totalorder %s123, %s124
      %p136 = scmp.eq.s32.totalorder %s30, 1
      %p137 = por %p135, %p136
      %p139 = scmp.ne.s32.totalorder %s124, %s138
      %p140 = scmp.eq.s32.totalorder %s30, 0
      %p141 = por %p139, %p140
      %s142 = ssub.s32 %s24, %s31
      %p143 = scmp.eq.s32.totalorder %s142, 0
      %s145 = sadd.s32 %s144, 1
      %s146 = scalar_select %p143, %s144, %s145
      %p149 = pneg %p143
      %p150 = scmp.eq.s32.totalorder %s24, 1
      %p151 = por %p149, %p150
      %p152 = scmp.ne.s32.totalorder %s144, %s147
      %p153 = scmp.eq.s32.totalorder %s24, 0
      %p154 = por %p152, %p153
      %p155 = scmp.ne.s32.totalorder %s144, %s147
      %p156 = scmp.eq.s32.totalorder %s29, 1
      %p157 = por %p155, %p156
      %p158 = scmp.ne.s32.totalorder %s147, %s148
      %p159 = scmp.eq.s32.totalorder %s29, 0
      %p160 = por %p158, %p159
      %p161 = scmp.ne.s32.totalorder %s147, %s148
      %p162 = scmp.eq.s32.totalorder %s30, 1
      %p163 = por %p161, %p162
      %p165 = scmp.ne.s32.totalorder %s148, %s164
      %p166 = scmp.eq.s32.totalorder %s30, 0
      %p167 = por %p165, %p166
      %s168 = ssub.s32 %s24, %s31
      %p169 = scmp.eq.s32.totalorder %s168, 0
      %s171 = sadd.s32 %s170, 1
      %s172 = scalar_select %p169, %s170, %s171
      %p175 = pneg %p169
      %p176 = scmp.eq.s32.totalorder %s24, 1
      %p177 = por %p175, %p176
      %p178 = scmp.ne.s32.totalorder %s170, %s173
      %p179 = scmp.eq.s32.totalorder %s24, 0
      %p180 = por %p178, %p179
      %p181 = scmp.ne.s32.totalorder %s170, %s173
      %p182 = scmp.eq.s32.totalorder %s29, 1
      %p183 = por %p181, %p182
      %p184 = scmp.ne.s32.totalorder %s173, %s174
      %p185 = scmp.eq.s32.totalorder %s29, 0
      %p186 = por %p184, %p185
      %p187 = scmp.ne.s32.totalorder %s173, %s174
      %p188 = scmp.eq.s32.totalorder %s30, 1
      %p189 = por %p187, %p188
      %p191 = scmp.ne.s32.totalorder %s174, %s190
      %p192 = scmp.eq.s32.totalorder %s30, 0
      %p193 = por %p191, %p192
      %s195 = sadd.s32 %s194, 1
      %p198 = scmp.eq.s32.totalorder %s24, 1
      %p199 = scmp.ne.s32.totalorder %s194, %s196
      %p200 = scmp.eq.s32.totalorder %s24, 0
      %p201 = por %p199, %p200
      %p202 = scmp.ne.s32.totalorder %s194, %s196
      %p203 = scmp.eq.s32.totalorder %s29, 1
      %p204 = por %p202, %p203
      %p205 = scmp.ne.s32.totalorder %s196, %s197
      %p206 = scmp.eq.s32.totalorder %s29, 0
      %p207 = por %p205, %p206
      %p208 = scmp.ne.s32.totalorder %s196, %s197
      %p209 = scmp.eq.s32.totalorder %s30, 1
      %p210 = por %p208, %p209
      %p212 = scmp.ne.s32.totalorder %s197, %s211
      %p213 = scmp.eq.s32.totalorder %s30, 0
      %p214 = por %p212, %p213
      %s216 = sadd.s32 %s215, 1
      %p219 = scmp.eq.s32.totalorder %s24, 1
      %p220 = scmp.ne.s32.totalorder %s215, %s217
      %p221 = scmp.eq.s32.totalorder %s24, 0
      %p222 = por %p220, %p221
      %p223 = scmp.ne.s32.totalorder %s215, %s217
      %p224 = scmp.eq.s32.totalorder %s29, 1
      %p225 = por %p223, %p224
      %p226 = scmp.ne.s32.totalorder %s217, %s218
      %p227 = scmp.eq.s32.totalorder %s29, 0
      %p228 = por %p226, %p227
      %p229 = scmp.ne.s32.totalorder %s217, %s218
      %p230 = scmp.eq.s32.totalorder %s30, 1
      %p231 = por %p229, %p230
      %p233 = scmp.ne.s32.totalorder %s218, %s232
      %p234 = scmp.eq.s32.totalorder %s30, 0
      %p235 = por %p233, %p234
      %s237 = sadd.s32 %s236, 1
      %p240 = scmp.eq.s32.totalorder %s24, 1
      %p241 = scmp.ne.s32.totalorder %s236, %s238
      %p242 = scmp.eq.s32.totalorder %s24, 0
      %p243 = por %p241, %p242
      %p244 = scmp.ne.s32.totalorder %s236, %s238
      %p245 = scmp.eq.s32.totalorder %s29, 1
      %p246 = por %p244, %p245
      %p247 = scmp.ne.s32.totalorder %s238, %s239
      %p248 = scmp.eq.s32.totalorder %s29, 0
      %p249 = por %p247, %p248
      %p250 = scmp.ne.s32.totalorder %s238, %s239
      %p251 = scmp.eq.s32.totalorder %s30, 1
      %p252 = por %p250, %p251
      %p254 = scmp.ne.s32.totalorder %s239, %s253
      %p255 = scmp.eq.s32.totalorder %s30, 0
      %p256 = por %p254, %p255
      %s258 = sadd.s32 %s257, 1
      %p261 = scmp.eq.s32.totalorder %s24, 1
      %p262 = scmp.ne.s32.totalorder %s257, %s259
      %p263 = scmp.eq.s32.totalorder %s24, 0
      %p264 = por %p262, %p263
      %p265 = scmp.ne.s32.totalorder %s257, %s259
      %p266 = scmp.eq.s32.totalorder %s29, 1
      %p267 = por %p265, %p266
      %p268 = scmp.ne.s32.totalorder %s259, %s260
      %p269 = scmp.eq.s32.totalorder %s29, 0
      %p270 = por %p268, %p269
      %p271 = scmp.ne.s32.totalorder %s259, %s260
      %p272 = scmp.eq.s32.totalorder %s30, 1
      %p273 = por %p271, %p272
      %p275 = scmp.ne.s32.totalorder %s260, %s274
      %p276 = scmp.eq.s32.totalorder %s30, 0
      %p277 = por %p275, %p276
      %s279 = sadd.s32 %s278, 1
      %p282 = scmp.eq.s32.totalorder %s24, 1
      %p283 = scmp.ne.s32.totalorder %s278, %s280
      %p284 = scmp.eq.s32.totalorder %s24, 0
      %p285 = por %p283, %p284
      %p286 = scmp.ne.s32.totalorder %s278, %s280
      %p287 = scmp.eq.s32.totalorder %s29, 1
      %p288 = por %p286, %p287
      %p289 = scmp.ne.s32.totalorder %s280, %s281
      %p290 = scmp.eq.s32.totalorder %s29, 0
      %p291 = por %p289, %p290
      %p292 = scmp.ne.s32.totalorder %s280, %s281
      %p293 = scmp.eq.s32.totalorder %s30, 1
      %p294 = por %p292, %p293
      %p296 = scmp.ne.s32.totalorder %s281, %s295
      %p297 = scmp.eq.s32.totalorder %s30, 0
      %p298 = por %p296, %p297
      %s300 = sadd.s32 %s299, 1
      %p303 = scmp.eq.s32.totalorder %s24, 1
      %p304 = scmp.ne.s32.totalorder %s299, %s301
      %p305 = scmp.eq.s32.totalorder %s24, 0
      %p306 = por %p304, %p305
      %p307 = scmp.ne.s32.totalorder %s299, %s301
      %p308 = scmp.eq.s32.totalorder %s29, 1
      %p309 = por %p307, %p308
      %p310 = scmp.ne.s32.totalorder %s301, %s302
      %p311 = scmp.eq.s32.totalorder %s29, 0
      %p312 = por %p310, %p311
      %p313 = scmp.ne.s32.totalorder %s301, %s302
      %p314 = scmp.eq.s32.totalorder %s30, 1
      %p315 = por %p313, %p314
      %p317 = scmp.ne.s32.totalorder %s302, %s316
      %p318 = scmp.eq.s32.totalorder %s30, 0
      %p319 = por %p317, %p318
      %s320 = ssub.s32 %s24, %s31
      %p321 = scmp.eq.s32.totalorder %s320, 0
      %s323 = sadd.s32 %s322, 1
      %s324 = scalar_select %p321, %s322, %s323
      %p327 = pneg %p321
      %p328 = scmp.eq.s32.totalorder %s24, 1
      %p329 = por %p327, %p328
      %p330 = scmp.ne.s32.totalorder %s322, %s325
      %p331 = scmp.eq.s32.totalorder %s24, 0
      %p332 = por %p330, %p331
      %p333 = scmp.ne.s32.totalorder %s322, %s325
      %p334 = scmp.eq.s32.totalorder %s29, 1
      %p335 = por %p333, %p334
      %p336 = scmp.ne.s32.totalorder %s325, %s326
      %p337 = scmp.eq.s32.totalorder %s29, 0
      %p338 = por %p336, %p337
      %p339 = scmp.ne.s32.totalorder %s325, %s326
      %p340 = scmp.eq.s32.totalorder %s30, 1
      %p341 = por %p339, %p340
      %p343 = scmp.ne.s32.totalorder %s326, %s342
      %p344 = scmp.eq.s32.totalorder %s30, 0
      %p345 = por %p343, %p344
      %p346 = scmp.le.s32.totalorder 1, %s24
      %p347 = scmp.lt.s32.totalorder %s24, 3
      %p348 = pnand %p346, %p347
      %p349 = pneg %p348
      // Predicated region
      $region9: #{tpu_custom_call.1} parent=5 // pred_check
        _
      $region10: #{tpu_custom_call.1} parent=5 // pred_check_branch
        %351 = sbr.rel (%p348) target = $region12
      $region11: #{tpu_custom_call.1} parent=5 // pred_region
        %s352 = ssub.s32 %s24, 1
        // Predicated region
        $region13: #{tpu_custom_call.1} parent=11 // pred_check
          %p353 = pneg %p71
        $region14: #{tpu_custom_call.1} parent=11 // pred_check_branch
          %355 = sbr.rel (%p353) target = $region16
        $region15: #{tpu_custom_call.1} parent=11 // pred_region
          %s357 = ssub.s32 256, 256
          %358 = vsyncadd [#allocation4], %s357
          %s359 = sshll.u32 [#allocation3], 4
          %s360 = int_to_ptr.vmem [resolvable:$true] %s359
          %365 = dma.hbm_to_vmem [thread:$0]  %s1, 256, %s360, [#allocation4], 128, 128, 8
        $region16: #{tpu_custom_call.1} parent=11 // pred_fallthru
          _
        // Predicated region
        $region17: #{tpu_custom_call.1} parent=11 // pred_check
          %p366 = pneg %p92
        $region18: #{tpu_custom_call.1} parent=11 // pred_check_branch
          %368 = sbr.rel (%p366) target = $region20
        $region19: #{tpu_custom_call.1} parent=11 // pred_region
          _
        $region20: #{tpu_custom_call.1} parent=11 // pred_fallthru
          _
        // Predicated region
        $region21: #{tpu_custom_call.1} parent=11 // pred_check
          %p369 = pneg %p113
        $region22: #{tpu_custom_call.1} parent=11 // pred_check_branch
          %371 = sbr.rel (%p369) target = $region24
        $region23: #{tpu_custom_call.1} parent=11 // pred_region
          %s373 = ssub.s32 256, 256
          %374 = vsyncadd [#allocation7], %s373
          %s375 = sshll.u32 [#allocation6], 4
          %s376 = int_to_ptr.vmem [resolvable:$true] %s375
          %381 = dma.hbm_to_vmem [thread:$0]  %s3, 256, %s376, [#allocation7], 128, 128, 8
        $region24: #{tpu_custom_call.1} parent=11 // pred_fallthru
          _
        // Predicated region
        $region25: #{tpu_custom_call.1} parent=11 // pred_check
          %p382 = pneg %p134
        $region26: #{tpu_custom_call.1} parent=11 // pred_check_branch
          %384 = sbr.rel (%p382) target = $region28
        $region27: #{tpu_custom_call.1} parent=11 // pred_region
          _
        $region28: #{tpu_custom_call.1} parent=11 // pred_fallthru
          _
        // Predicated region
        $region29: #{tpu_custom_call.1} parent=11 // pred_check
          %p385 = pneg %p207
        $region30: #{tpu_custom_call.1} parent=11 // pred_check_branch
          %387 = sbr.rel (%p385) target = $region32
        $region31: #{tpu_custom_call.1} parent=11 // pred_region
          _
        $region32: #{tpu_custom_call.1} parent=11 // pred_fallthru
          _
        // Predicated region
        $region33: #{tpu_custom_call.1} parent=11 // pred_check
          %p388 = pneg %p228
        $region34: #{tpu_custom_call.1} parent=11 // pred_check_branch
          %390 = sbr.rel (%p388) target = $region36
        $region35: #{tpu_custom_call.1} parent=11 // pred_region
          %s392 = ssub.s32 16, 16
          %393 = vsyncadd [#allocation7], %s392
          %s395 = sshll.u32 [#allocation8], 4
          %s396 = int_to_ptr.vmem [resolvable:$true] %s395
          %398 = dma.hbm_to_vmem [thread:$0]  %s8, 16, %s396, [#allocation7]
        $region36: #{tpu_custom_call.1} parent=11 // pred_fallthru
          _
        // Predicated region
        $region37: #{tpu_custom_call.1} parent=11 // pred_check
          %p399 = pneg %p249
        $region38: #{tpu_custom_call.1} parent=11 // pred_check_branch
          %401 = sbr.rel (%p399) target = $region40
        $region39: #{tpu_custom_call.1} parent=11 // pred_region
          _
        $region40: #{tpu_custom_call.1} parent=11 // pred_fallthru
          _
        // Predicated region
        $region41: #{tpu_custom_call.1} parent=11 // pred_check
          %p402 = pneg %p270
        $region42: #{tpu_custom_call.1} parent=11 // pred_check_branch
          %404 = sbr.rel (%p402) target = $region44
        $region43: #{tpu_custom_call.1} parent=11 // pred_region
          _
        $region44: #{tpu_custom_call.1} parent=11 // pred_fallthru
          _
        // Predicated region
        $region45: #{tpu_custom_call.1} parent=11 // pred_check
          %p405 = pneg %p291
        $region46: #{tpu_custom_call.1} parent=11 // pred_check_branch
          %407 = sbr.rel (%p405) target = $region48
        $region47: #{tpu_custom_call.1} parent=11 // pred_region
          _
        $region48: #{tpu_custom_call.1} parent=11 // pred_fallthru
          _
        // Predicated region
        $region49: #{tpu_custom_call.1} parent=11 // pred_check
          %p408 = pneg %p312
        $region50: #{tpu_custom_call.1} parent=11 // pred_check_branch
          %410 = sbr.rel (%p408) target = $region52
        $region51: #{tpu_custom_call.1} parent=11 // pred_region
          _
        $region52: #{tpu_custom_call.1} parent=11 // pred_fallthru
          _
      $region12: #{tpu_custom_call.1} parent=5 // pred_fallthru
        _
      %p411 = scmp.lt.s32.totalorder %s24, 2
      // Predicated region
      $region53: #{tpu_custom_call.1} parent=5 // pred_check
        %p412 = pneg %p411
      $region54: #{tpu_custom_call.1} parent=5 // pred_check_branch
        %414 = sbr.rel (%p412) target = $region56
      $region55: #{tpu_custom_call.1} parent=5 // pred_region
        // Predicated region
        $region57: #{tpu_custom_call.1} parent=55 // pred_check
          %p415 = pneg %p44
        $region58: #{tpu_custom_call.1} parent=55 // pred_check_branch
          %417 = sbr.rel (%p415) target = $region60
        $region59: #{tpu_custom_call.1} parent=55 // pred_region
          %p418 = scmp.lt.s32.totalorder %s24, 1
          %s419 = scalar_select %p418, %s24, 1
          %s420 = smul.addr %s419, 8
          %s421 = smul.addr %s420, 8
          %s422 = scalar_lea.vmem %s0, %s421
        $region60: #{tpu_custom_call.1} parent=55 // pred_fallthru
          _
        // Predicated region
        $region61: #{tpu_custom_call.1} parent=55 // pred_check
          %p423 = pneg %p154
        $region62: #{tpu_custom_call.1} parent=55 // pred_check_branch
          %425 = sbr.rel (%p423) target = $region64
        $region63: #{tpu_custom_call.1} parent=55 // pred_region
          %p426 = scmp.lt.s32.totalorder %s24, 1
          %s427 = scalar_select %p426, %s24, 1
          %s428 = smul.addr %s427, 2
          %s429 = smul.addr %s428, 8
          %s430 = scalar_lea.vmem %s5, %s429
        $region64: #{tpu_custom_call.1} parent=55 // pred_fallthru
          _
        // Predicated region
        $region65: #{tpu_custom_call.1} parent=55 // pred_check
          %p431 = pneg %p180
        $region66: #{tpu_custom_call.1} parent=55 // pred_check_branch
          %433 = sbr.rel (%p431) target = $region68
        $region67: #{tpu_custom_call.1} parent=55 // pred_region
          %p434 = scmp.lt.s32.totalorder %s24, 1
          %s435 = scalar_select %p434, %s24, 1
          %s436 = smul.addr %s435, 2
          %s437 = smul.addr %s436, 8
          %s438 = scalar_lea.vmem %s6, %s437
        $region68: #{tpu_custom_call.1} parent=55 // pred_fallthru
          _
      $region56: #{tpu_custom_call.1} parent=5 // pred_fallthru
        _
      %p439 = scmp.le.s32.totalorder 1, %s24
      %p440 = scmp.lt.s32.totalorder %s24, 3
      %p441 = pnand %p439, %p440
      %p442 = pneg %p441
      // Predicated region
      $region69: #{tpu_custom_call.1} parent=5 // pred_check
        _
      $region70: #{tpu_custom_call.1} parent=5 // pred_check_branch
        %444 = sbr.rel (%p441) target = $region72
      $region71: #{tpu_custom_call.1} parent=5 // pred_region
        %s445 = ssub.s32 %s24, 1
        // Predicated region
        $region73: #{tpu_custom_call.1} parent=71 // pred_check
          %p446 = pneg %p71
        $region74: #{tpu_custom_call.1} parent=71 // pred_check_branch
          %448 = sbr.rel (%p446) target = $region76
        $region75: #{tpu_custom_call.1} parent=71 // pred_region
          %449 = dma.done [#allocation4], 256
        $region76: #{tpu_custom_call.1} parent=71 // pred_fallthru
          _
        // Predicated region
        $region77: #{tpu_custom_call.1} parent=71 // pred_check
          %p450 = pneg %p113
        $region78: #{tpu_custom_call.1} parent=71 // pred_check_branch
          %452 = sbr.rel (%p450) target = $region80
        $region79: #{tpu_custom_call.1} parent=71 // pred_region
          %453 = dma.done [#allocation7], 256
        $region80: #{tpu_custom_call.1} parent=71 // pred_fallthru
          _
        // Predicated region
        $region81: #{tpu_custom_call.1} parent=71 // pred_check
          %p454 = pneg %p228
        $region82: #{tpu_custom_call.1} parent=71 // pred_check_branch
          %456 = sbr.rel (%p454) target = $region84
        $region83: #{tpu_custom_call.1} parent=71 // pred_region
          %457 = dma.done [#allocation7], 16
        $region84: #{tpu_custom_call.1} parent=71 // pred_fallthru
          _
        %p458 = scmp.lt.s32.totalorder %s29, 1
        %s459 = scalar_select %p458, %s29, 1
        %s460 = smul.addr %s459, 8
        %s461 = smul.addr %s460, 8
        %s462 = scalar_lea.vmem %s0, %s461
        %p463 = pneg %p50
        %p464 = pneg %p47
        %p465 = pneg %p71
        %p466 = pneg %p68
        %p467 = pneg %p92
        %p468 = pneg %p89
        %p469 = pneg %p113
        %p470 = pneg %p110
        %p471 = pneg %p134
        %p472 = pneg %p131
        %p473 = scmp.lt.s32.totalorder %s29, 1
        %s474 = scalar_select %p473, %s29, 1
        %s475 = smul.addr %s474, 2
        %s476 = smul.addr %s475, 8
        %s477 = scalar_lea.vmem %s5, %s476
        %p478 = pneg %p160
        %p479 = pneg %p157
        %p480 = scmp.lt.s32.totalorder %s29, 1
        %s481 = scalar_select %p480, %s29, 1
        %s482 = smul.addr %s481, 2
        %s483 = smul.addr %s482, 8
        %s484 = scalar_lea.vmem %s6, %s483
        %p485 = pneg %p186
        %p486 = pneg %p183
        %p487 = pneg %p207
        %p488 = pneg %p204
        %p489 = pneg %p228
        %p490 = pneg %p225
        %p491 = pneg %p249
        %p492 = pneg %p246
        %p493 = pneg %p270
        %p494 = pneg %p267
        %p495 = pneg %p291
        %p496 = pneg %p288
        %p497 = pneg %p312
        %p498 = pneg %p309
        %p499 = pneg %p338
        %p500 = pneg %p335
        %s501 = sand.u32 %s325, 1
        %s502 = scalar_lea.sflag [#allocation5], %s501
        %s503 = sand.u32 %s325, 1
        %s504 = smul.addr %s503, 64
        %s505 = scalar_lea.vmem [#allocation9], %s504
        %p506 = scmp.lt.s32.totalorder %s29, 1
        %s507 = scalar_select %p506, %s29, 1
        %s508 = smul.addr %s507, 8
        %s509 = smul.addr %s508, 8
        %s510 = scalar_lea.vmem %s0, %s509
        %p511 = scmp.lt.s32.totalorder %s29, 1
        %s512 = scalar_select %p511, %s29, 1
        %s513 = smul.addr %s512, 2
        %s514 = smul.addr %s513, 8
        %s515 = scalar_lea.vmem %s5, %s514
        %p516 = scmp.lt.s32.totalorder %s29, 1
        %s517 = scalar_select %p516, %s29, 1
        %s518 = smul.addr %s517, 2
        %s519 = smul.addr %s518, 8
        %s520 = scalar_lea.vmem %s6, %s519
        %v522 = vld [vmem:[%s510] sm:$0xff]
        %v523 = vld [vmem:[%s510 + $0x8] sm:$0xff]
        %v524 = vld [vmem:[%s510 + $0x10] sm:$0xff]
        %v525 = vld [vmem:[%s510 + $0x18] sm:$0xff]
        %v526 = vld [vmem:[%s510 + $0x20] sm:$0xff]
        %v527 = vld [vmem:[%s510 + $0x28] sm:$0xff]
        %v528 = vld [vmem:[%s510 + $0x30] sm:$0xff]
        %v529 = vld [vmem:[%s510 + $0x38] sm:$0xff]
        %v530 = vld [vmem:[%s515] sm:$0xff]
        %v531 = vld [vmem:[%s515 + $0x8] sm:$0xff]
        %v532 = vld [vmem:[%s12] ss:$2 sm:$0xf]
        %534 = vset.pattern.permute.xlu0 0
        %535 = vperm.xlu0 %534, %v530
        %v536 = vpop.permute.xlu0 %535
        %539 = vset.pattern.permute.xlu0 0
        %540 = vperm.xlu0 %539, %v531
        %v541 = vpop.permute.xlu0 %540
        %v544 = vlaneseq
        %v545 = vshrl.u32 %v544, 7
        %v546 = vsub.s32 0, %v545
        %v547 = vrot.slane %v532, %v546
        %v548 = vlaneseq
        %v549 = vshrl.u32 %v548, 7
        %v550 = vsub.s32 1, %v549
        %v551 = vrot.slane %v532, %v550
        %v552 = vlaneseq
        %v553 = vshrl.u32 %v552, 7
        %v554 = vsub.s32 2, %v553
        %v555 = vrot.slane %v532, %v554
        %v556 = vlaneseq
        %v557 = vshrl.u32 %v556, 7
        %v558 = vsub.s32 3, %v557
        %v559 = vrot.slane %v532, %v558
        %v564 = vmul.f32 %v536, %v547
        %v565 = vmul.f32 %v536, %v551
        %v566 = vmul.f32 %v536, %v555
        %v567 = vmul.f32 %v536, %v559
        %v568 = vmul.f32 %v541, %v547
        %v569 = vmul.f32 %v541, %v551
        %v570 = vmul.f32 %v541, %v555
        %v571 = vmul.f32 %v541, %v559
        %s572 = scalar_lea.vmem %s12, 1
        %v573 = vld [vmem:[%s572] ss:$2 sm:$0xf]
        %574 = vset.pattern.permute.xlu0 1
        %575 = vperm.xlu0 %574, %v530
        %v576 = vpop.permute.xlu0 %575
        %578 = vset.pattern.permute.xlu0 1
        %579 = vperm.xlu0 %578, %v531
        %v580 = vpop.permute.xlu0 %579
        %v583 = vlaneseq
        %v584 = vshrl.u32 %v583, 7
        %v585 = vsub.s32 0, %v584
        %v586 = vrot.slane %v573, %v585
        %v587 = vlaneseq
        %v588 = vshrl.u32 %v587, 7
        %v589 = vsub.s32 1, %v588
        %v590 = vrot.slane %v573, %v589
        %v591 = vlaneseq
        %v592 = vshrl.u32 %v591, 7
        %v593 = vsub.s32 2, %v592
        %v594 = vrot.slane %v573, %v593
        %v595 = vlaneseq
        %v596 = vshrl.u32 %v595, 7
        %v597 = vsub.s32 3, %v596
        %v598 = vrot.slane %v573, %v597
        %v603 = vmul.f32 %v576, %v586
        %v604 = vmul.f32 %v576, %v590
        %v605 = vmul.f32 %v576, %v594
        %v606 = vmul.f32 %v576, %v598
        %v607 = vmul.f32 %v580, %v586
        %v608 = vmul.f32 %v580, %v590
        %v609 = vmul.f32 %v580, %v594
        %v610 = vmul.f32 %v580, %v598
        %v611 = vadd.f32 %v564, %v603
        %v612 = vadd.f32 %v565, %v604
        %v613 = vadd.f32 %v566, %v605
        %v614 = vadd.f32 %v567, %v606
        %v615 = vadd.f32 %v568, %v607
        %v616 = vadd.f32 %v569, %v608
        %v617 = vadd.f32 %v570, %v609
        %v618 = vadd.f32 %v571, %v610
        %v619 = vld [vmem:[%s520] sm:$0xff]
        %v620 = vld [vmem:[%s520 + $0x8] sm:$0xff]
        %622 = vset.pattern.permute.xlu0 0
        %623 = vperm.xlu0 %622, %v619
        %v624 = vpop.permute.xlu0 %623
        %627 = vset.pattern.permute.xlu0 0
        %628 = vperm.xlu0 %627, %v620
        %v629 = vpop.permute.xlu0 %628
        %v631 = vmul.f32 %v624, %v547
        %v632 = vmul.f32 %v624, %v551
        %v633 = vmul.f32 %v624, %v555
        %v634 = vmul.f32 %v624, %v559
        %v635 = vmul.f32 %v629, %v547
        %v636 = vmul.f32 %v629, %v551
        %v637 = vmul.f32 %v629, %v555
        %v638 = vmul.f32 %v629, %v559
        %639 = vset.pattern.permute.xlu0 1
        %640 = vperm.xlu0 %639, %v619
        %v641 = vpop.permute.xlu0 %640
        %643 = vset.pattern.permute.xlu0 1
        %644 = vperm.xlu0 %643, %v620
        %v645 = vpop.permute.xlu0 %644
        %v647 = vmul.f32 %v641, %v586
        %v648 = vmul.f32 %v641, %v590
        %v649 = vmul.f32 %v641, %v594
        %v650 = vmul.f32 %v641, %v598
        %v651 = vmul.f32 %v645, %v586
        %v652 = vmul.f32 %v645, %v590
        %v653 = vmul.f32 %v645, %v594
        %v654 = vmul.f32 %v645, %v598
        %v655 = vadd.f32 %v631, %v647
        %v656 = vadd.f32 %v632, %v648
        %v657 = vadd.f32 %v633, %v649
        %v658 = vadd.f32 %v634, %v650
        %v659 = vadd.f32 %v635, %v651
        %v660 = vadd.f32 %v636, %v652
        %v661 = vadd.f32 %v637, %v653
        %v662 = vadd.f32 %v638, %v654
        %663 = vrot.lane.b32.xlu0 %v522, 17
        %v664 = vpop.permute.xlu0 %663
        %665 = vrot.lane.b32.xlu0 %v526, 17
        %v666 = vpop.permute.xlu0 %665
        %667 = vrot.lane.b32.xlu0 %v523, 17
        %v668 = vpop.permute.xlu0 %667
        %669 = vrot.lane.b32.xlu0 %v527, 17
        %v670 = vpop.permute.xlu0 %669
        %671 = vrot.lane.b32.xlu0 %v524, 17
        %v672 = vpop.permute.xlu0 %671
        %673 = vrot.lane.b32.xlu0 %v528, 17
        %v674 = vpop.permute.xlu0 %673
        %675 = vrot.lane.b32.xlu0 %v525, 17
        %v676 = vpop.permute.xlu0 %675
        %677 = vrot.lane.b32.xlu0 %v529, 17
        %v678 = vpop.permute.xlu0 %677
        %v679 = vlaneseq
        %v680 = vand.u32 %v679, 127
        %vm681 = vcmp.lt.s32.totalorder %v680, 17
        %v682 = vsel %vm681, %v672, %v676
        %v683 = vsel %vm681, %v674, %v678
        %v684 = vsel %vm681, %v668, %v672
        %v685 = vsel %vm681, %v670, %v674
        %v686 = vsel %vm681, %v664, %v668
        %v687 = vsel %vm681, %v666, %v670
        %v688 = vsel %vm681, %v676, %v664
        %v689 = vsel %vm681, %v678, %v666
        %v690 = vld [vmem:[%s11] ss:$8 sm:$0xf]
        %v692 = vlaneseq
        %v693 = vshrl.u32 %v692, 7
        %v694 = vsub.s32 0, %v693
        %v695 = vrot.slane %v690, %v694
        %v696 = vlaneseq
        %v697 = vshrl.u32 %v696, 7
        %v698 = vsub.s32 1, %v697
        %v699 = vrot.slane %v690, %v698
        %v700 = vlaneseq
        %v701 = vshrl.u32 %v700, 7
        %v702 = vsub.s32 2, %v701
        %v703 = vrot.slane %v690, %v702
        %v704 = vlaneseq
        %v705 = vshrl.u32 %v704, 7
        %v706 = vsub.s32 3, %v705
        %v707 = vrot.slane %v690, %v706
        %v712 = vmul.f32 %v688, %v695
        %v713 = vmul.f32 %v686, %v699
        %v714 = vmul.f32 %v684, %v703
        %v715 = vmul.f32 %v682, %v707
        %v716 = vmul.f32 %v689, %v695
        %v717 = vmul.f32 %v687, %v699
        %v718 = vmul.f32 %v685, %v703
        %v719 = vmul.f32 %v683, %v707
        %v720 = vpack.c.bf16 %v716, %v712
        %v721 = vpack.c.bf16 %v717, %v713
        %v722 = vpack.c.bf16 %v718, %v714
        %v723 = vpack.c.bf16 %v719, %v715
        %724 = vst [vmem:[#allocation2] sm:$0xff] %v720
        %725 = vst [vmem:[#allocation2 + $0x8] sm:$0xff] %v721
        %726 = vst [vmem:[#allocation2 + $0x10] sm:$0xff] %v722
        %727 = vst [vmem:[#allocation2 + $0x18] sm:$0xff] %v723
        %728 = vrot.lane.b32.xlu0 %v522, 16
        %v729 = vpop.permute.xlu0 %728
        %730 = vrot.lane.b32.xlu0 %v526, 16
        %v731 = vpop.permute.xlu0 %730
        %732 = vrot.lane.b32.xlu0 %v523, 16
        %v733 = vpop.permute.xlu0 %732
        %734 = vrot.lane.b32.xlu0 %v527, 16
        %v735 = vpop.permute.xlu0 %734
        %736 = vrot.lane.b32.xlu0 %v524, 16
        %v737 = vpop.permute.xlu0 %736
        %738 = vrot.lane.b32.xlu0 %v528, 16
        %v739 = vpop.permute.xlu0 %738
        %740 = vrot.lane.b32.xlu0 %v525, 16
        %v741 = vpop.permute.xlu0 %740
        %742 = vrot.lane.b32.xlu0 %v529, 16
        %v743 = vpop.permute.xlu0 %742
        %vm744 = vcmp.lt.s32.totalorder %v680, 16
        %v745 = vsel %vm744, %v737, %v741
        %v746 = vsel %vm744, %v739, %v743
        %v747 = vsel %vm744, %v733, %v737
        %v748 = vsel %vm744, %v735, %v739
        %v749 = vsel %vm744, %v729, %v733
        %v750 = vsel %vm744, %v731, %v735
        %v751 = vsel %vm744, %v741, %v729
        %v752 = vsel %vm744, %v743, %v731
        %s753 = scalar_lea.vmem %s11, 1
        %v754 = vld [vmem:[%s753] ss:$8 sm:$0xf]
        %v756 = vlaneseq
        %v757 = vshrl.u32 %v756, 7
        %v758 = vsub.s32 0, %v757
        %v759 = vrot.slane %v754, %v758
        %v760 = vlaneseq
        %v761 = vshrl.u32 %v760, 7
        %v762 = vsub.s32 1, %v761
        %v763 = vrot.slane %v754, %v762
        %v764 = vlaneseq
        %v765 = vshrl.u32 %v764, 7
        %v766 = vsub.s32 2, %v765
        %v767 = vrot.slane %v754, %v766
        %v768 = vlaneseq
        %v769 = vshrl.u32 %v768, 7
        %v770 = vsub.s32 3, %v769
        %v771 = vrot.slane %v754, %v770
        %v776 = vmul.f32 %v751, %v759
        %v777 = vmul.f32 %v749, %v763
        %v778 = vmul.f32 %v747, %v767
        %v779 = vmul.f32 %v745, %v771
        %v780 = vmul.f32 %v752, %v759
        %v781 = vmul.f32 %v750, %v763
        %v782 = vmul.f32 %v748, %v767
        %v783 = vmul.f32 %v746, %v771
        %v784 = vpack.c.bf16 %v780, %v776
        %v785 = vpack.c.bf16 %v781, %v777
        %v786 = vpack.c.bf16 %v782, %v778
        %v787 = vpack.c.bf16 %v783, %v779
        %788 = vst [vmem:[#allocation2 + $0x20] sm:$0xff] %v784
        %789 = vst [vmem:[#allocation2 + $0x28] sm:$0xff] %v785
        %790 = vst [vmem:[#allocation2 + $0x30] sm:$0xff] %v786
        %791 = vst [vmem:[#allocation2 + $0x38] sm:$0xff] %v787
        %792 = vrot.lane.b32.xlu0 %v522, 15
        %v793 = vpop.permute.xlu0 %792
        %794 = vrot.lane.b32.xlu0 %v526, 15
        %v795 = vpop.permute.xlu0 %794
        %796 = vrot.lane.b32.xlu0 %v523, 15
        %v797 = vpop.permute.xlu0 %796
        %798 = vrot.lane.b32.xlu0 %v527, 15
        %v799 = vpop.permute.xlu0 %798
        %800 = vrot.lane.b32.xlu0 %v524, 15
        %v801 = vpop.permute.xlu0 %800
        %802 = vrot.lane.b32.xlu0 %v528, 15
        %v803 = vpop.permute.xlu0 %802
        %804 = vrot.lane.b32.xlu0 %v525, 15
        %v805 = vpop.permute.xlu0 %804
        %806 = vrot.lane.b32.xlu0 %v529, 15
        %v807 = vpop.permute.xlu0 %806
        %vm808 = vcmp.lt.s32.totalorder %v680, 15
        %v809 = vsel %vm808, %v801, %v805
        %v810 = vsel %vm808, %v803, %v807
        %v811 = vsel %vm808, %v797, %v801
        %v812 = vsel %vm808, %v799, %v803
        %v813 = vsel %vm808, %v793, %v797
        %v814 = vsel %vm808, %v795, %v799
        %v815 = vsel %vm808, %v805, %v793
        %v816 = vsel %vm808, %v807, %v795
        %s817 = scalar_lea.vmem %s11, 2
        %v818 = vld [vmem:[%s817] ss:$8 sm:$0xf]
        %v820 = vlaneseq
        %v821 = vshrl.u32 %v820, 7
        %v822 = vsub.s32 0, %v821
        %v823 = vrot.slane %v818, %v822
        %v824 = vlaneseq
        %v825 = vshrl.u32 %v824, 7
        %v826 = vsub.s32 1, %v825
        %v827 = vrot.slane %v818, %v826
        %v828 = vlaneseq
        %v829 = vshrl.u32 %v828, 7
        %v830 = vsub.s32 2, %v829
        %v831 = vrot.slane %v818, %v830
        %v832 = vlaneseq
        %v833 = vshrl.u32 %v832, 7
        %v834 = vsub.s32 3, %v833
        %v835 = vrot.slane %v818, %v834
        %v840 = vmul.f32 %v815, %v823
        %v841 = vmul.f32 %v813, %v827
        %v842 = vmul.f32 %v811, %v831
        %v843 = vmul.f32 %v809, %v835
        %v844 = vmul.f32 %v816, %v823
        %v845 = vmul.f32 %v814, %v827
        %v846 = vmul.f32 %v812, %v831
        %v847 = vmul.f32 %v810, %v835
        %v848 = vpack.c.bf16 %v844, %v840
        %v849 = vpack.c.bf16 %v845, %v841
        %v850 = vpack.c.bf16 %v846, %v842
        %v851 = vpack.c.bf16 %v847, %v843
        %852 = vst [vmem:[#allocation2 + $0x40] sm:$0xff] %v848
        %853 = vst [vmem:[#allocation2 + $0x48] sm:$0xff] %v849
        %854 = vst [vmem:[#allocation2 + $0x50] sm:$0xff] %v850
        %855 = vst [vmem:[#allocation2 + $0x58] sm:$0xff] %v851
        %856 = vrot.lane.b32.xlu0 %v522, 1
        %v857 = vpop.permute.xlu0 %856
        %858 = vrot.lane.b32.xlu0 %v526, 1
        %v859 = vpop.permute.xlu0 %858
        %860 = vrot.lane.b32.xlu0 %v523, 1
        %v861 = vpop.permute.xlu0 %860
        %862 = vrot.lane.b32.xlu0 %v527, 1
        %v863 = vpop.permute.xlu0 %862
        %864 = vrot.lane.b32.xlu0 %v524, 1
        %v865 = vpop.permute.xlu0 %864
        %866 = vrot.lane.b32.xlu0 %v528, 1
        %v867 = vpop.permute.xlu0 %866
        %868 = vrot.lane.b32.xlu0 %v525, 1
        %v869 = vpop.permute.xlu0 %868
        %870 = vrot.lane.b32.xlu0 %v529, 1
        %v871 = vpop.permute.xlu0 %870
        %vm872 = vcmp.lt.s32.totalorder %v680, 1
        %v873 = vsel %vm872, %v865, %v869
        %v874 = vsel %vm872, %v867, %v871
        %v875 = vsel %vm872, %v861, %v865
        %v876 = vsel %vm872, %v863, %v867
        %v877 = vsel %vm872, %v857, %v861
        %v878 = vsel %vm872, %v859, %v863
        %v879 = vsel %vm872, %v869, %v857
        %v880 = vsel %vm872, %v871, %v859
        %s881 = scalar_lea.vmem %s11, 3
        %v882 = vld [vmem:[%s881] ss:$8 sm:$0xf]
        %v884 = vlaneseq
        %v885 = vshrl.u32 %v884, 7
        %v886 = vsub.s32 0, %v885
        %v887 = vrot.slane %v882, %v886
        %v888 = vlaneseq
        %v889 = vshrl.u32 %v888, 7
        %v890 = vsub.s32 1, %v889
        %v891 = vrot.slane %v882, %v890
        %v892 = vlaneseq
        %v893 = vshrl.u32 %v892, 7
        %v894 = vsub.s32 2, %v893
        %v895 = vrot.slane %v882, %v894
        %v896 = vlaneseq
        %v897 = vshrl.u32 %v896, 7
        %v898 = vsub.s32 3, %v897
        %v899 = vrot.slane %v882, %v898
        %v904 = vmul.f32 %v879, %v887
        %v905 = vmul.f32 %v877, %v891
        %v906 = vmul.f32 %v875, %v895
        %v907 = vmul.f32 %v873, %v899
        %v908 = vmul.f32 %v880, %v887
        %v909 = vmul.f32 %v878, %v891
        %v910 = vmul.f32 %v876, %v895
        %v911 = vmul.f32 %v874, %v899
        %v912 = vpack.c.bf16 %v908, %v904
        %v913 = vpack.c.bf16 %v909, %v905
        %v914 = vpack.c.bf16 %v910, %v906
        %v915 = vpack.c.bf16 %v911, %v907
        %916 = vst [vmem:[#allocation2 + $0x60] sm:$0xff] %v912
        %917 = vst [vmem:[#allocation2 + $0x68] sm:$0xff] %v913
        %918 = vst [vmem:[#allocation2 + $0x70] sm:$0xff] %v914
        %919 = vst [vmem:[#allocation2 + $0x78] sm:$0xff] %v915
        %v920 = vpack.c.bf16 %v526, %v522
        %v921 = vpack.c.bf16 %v527, %v523
        %v922 = vpack.c.bf16 %v528, %v524
        %v923 = vpack.c.bf16 %v529, %v525
        %924 = vst [vmem:[#allocation2 + $0x80] sm:$0xff] %v920
        %925 = vst [vmem:[#allocation2 + $0x88] sm:$0xff] %v921
        %926 = vst [vmem:[#allocation2 + $0x90] sm:$0xff] %v922
        %927 = vst [vmem:[#allocation2 + $0x98] sm:$0xff] %v923
        %928 = vrot.lane.b32.xlu0 %v522, 127
        %v929 = vpop.permute.xlu0 %928
        %930 = vrot.lane.b32.xlu0 %v526, 127
        %v931 = vpop.permute.xlu0 %930
        %932 = vrot.lane.b32.xlu0 %v523, 127
        %v933 = vpop.permute.xlu0 %932
        %934 = vrot.lane.b32.xlu0 %v527, 127
        %v935 = vpop.permute.xlu0 %934
        %936 = vrot.lane.b32.xlu0 %v524, 127
        %v937 = vpop.permute.xlu0 %936
        %938 = vrot.lane.b32.xlu0 %v528, 127
        %v939 = vpop.permute.xlu0 %938
        %940 = vrot.lane.b32.xlu0 %v525, 127
        %v941 = vpop.permute.xlu0 %940
        %942 = vrot.lane.b32.xlu0 %v529, 127
        %v943 = vpop.permute.xlu0 %942
        %vm944 = vcmp.lt.s32.totalorder %v680, 127
        %v945 = vsel %vm944, %v937, %v941
        %v946 = vsel %vm944, %v939, %v943
        %v947 = vsel %vm944, %v933, %v937
        %v948 = vsel %vm944, %v935, %v939
        %v949 = vsel %vm944, %v929, %v933
        %v950 = vsel %vm944, %v931, %v935
        %v951 = vsel %vm944, %v941, %v929
        %v952 = vsel %vm944, %v943, %v931
        %s953 = scalar_lea.vmem %s11, 5
        %v954 = vld [vmem:[%s953] ss:$8 sm:$0xf]
        %v956 = vlaneseq
        %v957 = vshrl.u32 %v956, 7
        %v958 = vsub.s32 0, %v957
        %v959 = vrot.slane %v954, %v958
        %v960 = vlaneseq
        %v961 = vshrl.u32 %v960, 7
        %v962 = vsub.s32 1, %v961
        %v963 = vrot.slane %v954, %v962
        %v964 = vlaneseq
        %v965 = vshrl.u32 %v964, 7
        %v966 = vsub.s32 2, %v965
        %v967 = vrot.slane %v954, %v966
        %v968 = vlaneseq
        %v969 = vshrl.u32 %v968, 7
        %v970 = vsub.s32 3, %v969
        %v971 = vrot.slane %v954, %v970
        %v976 = vmul.f32 %v949, %v959
        %v977 = vmul.f32 %v947, %v963
        %v978 = vmul.f32 %v945, %v967
        %v979 = vmul.f32 %v951, %v971
        %v980 = vmul.f32 %v950, %v959
        %v981 = vmul.f32 %v948, %v963
        %v982 = vmul.f32 %v946, %v967
        %v983 = vmul.f32 %v952, %v971
        %v984 = vpack.c.bf16 %v980, %v976
        %v985 = vpack.c.bf16 %v981, %v977
        %v986 = vpack.c.bf16 %v982, %v978
        %v987 = vpack.c.bf16 %v983, %v979
        %988 = vst [vmem:[#allocation2 + $0xa0] sm:$0xff] %v984
        %989 = vst [vmem:[#allocation2 + $0xa8] sm:$0xff] %v985
        %990 = vst [vmem:[#allocation2 + $0xb0] sm:$0xff] %v986
        %991 = vst [vmem:[#allocation2 + $0xb8] sm:$0xff] %v987
        %992 = vrot.lane.b32.xlu0 %v522, 113
        %v993 = vpop.permute.xlu0 %992
        %994 = vrot.lane.b32.xlu0 %v526, 113
        %v995 = vpop.permute.xlu0 %994
        %996 = vrot.lane.b32.xlu0 %v523, 113
        %v997 = vpop.permute.xlu0 %996
        %998 = vrot.lane.b32.xlu0 %v527, 113
        %v999 = vpop.permute.xlu0 %998
        %1000 = vrot.lane.b32.xlu0 %v524, 113
        %v1001 = vpop.permute.xlu0 %1000
        %1002 = vrot.lane.b32.xlu0 %v528, 113
        %v1003 = vpop.permute.xlu0 %1002
        %1004 = vrot.lane.b32.xlu0 %v525, 113
        %v1005 = vpop.permute.xlu0 %1004
        %1006 = vrot.lane.b32.xlu0 %v529, 113
        %v1007 = vpop.permute.xlu0 %1006
        %vm1008 = vcmp.lt.s32.totalorder %v680, 113
        %v1009 = vsel %vm1008, %v1001, %v1005
        %v1010 = vsel %vm1008, %v1003, %v1007
        %v1011 = vsel %vm1008, %v997, %v1001
        %v1012 = vsel %vm1008, %v999, %v1003
        %v1013 = vsel %vm1008, %v993, %v997
        %v1014 = vsel %vm1008, %v995, %v999
        %v1015 = vsel %vm1008, %v1005, %v993
        %v1016 = vsel %vm1008, %v1007, %v995
        %s1017 = scalar_lea.vmem %s11, 6
        %v1018 = vld [vmem:[%s1017] ss:$8 sm:$0xf]
        %v1020 = vlaneseq
        %v1021 = vshrl.u32 %v1020, 7
        %v1022 = vsub.s32 0, %v1021
        %v1023 = vrot.slane %v1018, %v1022
        %v1024 = vlaneseq
        %v1025 = vshrl.u32 %v1024, 7
        %v1026 = vsub.s32 1, %v1025
        %v1027 = vrot.slane %v1018, %v1026
        %v1028 = vlaneseq
        %v1029 = vshrl.u32 %v1028, 7
        %v1030 = vsub.s32 2, %v1029
        %v1031 = vrot.slane %v1018, %v1030
        %v1032 = vlaneseq
        %v1033 = vshrl.u32 %v1032, 7
        %v1034 = vsub.s32 3, %v1033
        %v1035 = vrot.slane %v1018, %v1034
        %v1040 = vmul.f32 %v1013, %v1023
        %v1041 = vmul.f32 %v1011, %v1027
        %v1042 = vmul.f32 %v1009, %v1031
        %v1043 = vmul.f32 %v1015, %v1035
        %v1044 = vmul.f32 %v1014, %v1023
        %v1045 = vmul.f32 %v1012, %v1027
        %v1046 = vmul.f32 %v1010, %v1031
        %v1047 = vmul.f32 %v1016, %v1035
        %v1048 = vpack.c.bf16 %v1044, %v1040
        %v1049 = vpack.c.bf16 %v1045, %v1041
        %v1050 = vpack.c.bf16 %v1046, %v1042
        %v1051 = vpack.c.bf16 %v1047, %v1043
        %1052 = vst [vmem:[#allocation2 + $0xc0] sm:$0xff] %v1048
        %1053 = vst [vmem:[#allocation2 + $0xc8] sm:$0xff] %v1049
        %1054 = vst [vmem:[#allocation2 + $0xd0] sm:$0xff] %v1050
        %1055 = vst [vmem:[#allocation2 + $0xd8] sm:$0xff] %v1051
        %1056 = vrot.lane.b32.xlu0 %v522, 112
        %v1057 = vpop.permute.xlu0 %1056
        %1058 = vrot.lane.b32.xlu0 %v526, 112
        %v1059 = vpop.permute.xlu0 %1058
        %1060 = vrot.lane.b32.xlu0 %v523, 112
        %v1061 = vpop.permute.xlu0 %1060
        %1062 = vrot.lane.b32.xlu0 %v527, 112
        %v1063 = vpop.permute.xlu0 %1062
        %1064 = vrot.lane.b32.xlu0 %v524, 112
        %v1065 = vpop.permute.xlu0 %1064
        %1066 = vrot.lane.b32.xlu0 %v528, 112
        %v1067 = vpop.permute.xlu0 %1066
        %1068 = vrot.lane.b32.xlu0 %v525, 112
        %v1069 = vpop.permute.xlu0 %1068
        %1070 = vrot.lane.b32.xlu0 %v529, 112
        %v1071 = vpop.permute.xlu0 %1070
        %vm1072 = vcmp.lt.s32.totalorder %v680, 112
        %v1073 = vsel %vm1072, %v1065, %v1069
        %v1074 = vsel %vm1072, %v1067, %v1071
        %v1075 = vsel %vm1072, %v1061, %v1065
        %v1076 = vsel %vm1072, %v1063, %v1067
        %v1077 = vsel %vm1072, %v1057, %v1061
        %v1078 = vsel %vm1072, %v1059, %v1063
        %v1079 = vsel %vm1072, %v1069, %v1057
        %v1080 = vsel %vm1072, %v1071, %v1059
        %s1081 = scalar_lea.vmem %s11, 7
        %v1082 = vld [vmem:[%s1081] ss:$8 sm:$0xf]
        %v1084 = vlaneseq
        %v1085 = vshrl.u32 %v1084, 7
        %v1086 = vsub.s32 0, %v1085
        %v1087 = vrot.slane %v1082, %v1086
        %v1088 = vlaneseq
        %v1089 = vshrl.u32 %v1088, 7
        %v1090 = vsub.s32 1, %v1089
        %v1091 = vrot.slane %v1082, %v1090
        %v1092 = vlaneseq
        %v1093 = vshrl.u32 %v1092, 7
        %v1094 = vsub.s32 2, %v1093
        %v1095 = vrot.slane %v1082, %v1094
        %v1096 = vlaneseq
        %v1097 = vshrl.u32 %v1096, 7
        %v1098 = vsub.s32 3, %v1097
        %v1099 = vrot.slane %v1082, %v1098
        %v1104 = vmul.f32 %v1077, %v1087
        %v1105 = vmul.f32 %v1075, %v1091
        %v1106 = vmul.f32 %v1073, %v1095
        %v1107 = vmul.f32 %v1079, %v1099
        %v1108 = vmul.f32 %v1078, %v1087
        %v1109 = vmul.f32 %v1076, %v1091
        %v1110 = vmul.f32 %v1074, %v1095
        %v1111 = vmul.f32 %v1080, %v1099
        %v1112 = vpack.c.bf16 %v1108, %v1104
        %v1113 = vpack.c.bf16 %v1109, %v1105
        %v1114 = vpack.c.bf16 %v1110, %v1106
        %v1115 = vpack.c.bf16 %v1111, %v1107
        %1116 = vst [vmem:[#allocation2 + $0xe0] sm:$0xff] %v1112
        %1117 = vst [vmem:[#allocation2 + $0xe8] sm:$0xff] %v1113
        %1118 = vst [vmem:[#allocation2 + $0xf0] sm:$0xff] %v1114
        %1119 = vst [vmem:[#allocation2 + $0xf8] sm:$0xff] %v1115
        %1120 = vrot.lane.b32.xlu0 %v522, 111
        %v1121 = vpop.permute.xlu0 %1120
        %1122 = vrot.lane.b32.xlu0 %v526, 111
        %v1123 = vpop.permute.xlu0 %1122
        %1124 = vrot.lane.b32.xlu0 %v523, 111
        %v1125 = vpop.permute.xlu0 %1124
        %1126 = vrot.lane.b32.xlu0 %v527, 111
        %v1127 = vpop.permute.xlu0 %1126
        %1128 = vrot.lane.b32.xlu0 %v524, 111
        %v1129 = vpop.permute.xlu0 %1128
        %1130 = vrot.lane.b32.xlu0 %v528, 111
        %v1131 = vpop.permute.xlu0 %1130
        %1132 = vrot.lane.b32.xlu0 %v525, 111
        %v1133 = vpop.permute.xlu0 %1132
        %1134 = vrot.lane.b32.xlu0 %v529, 111
        %v1135 = vpop.permute.xlu0 %1134
        %vm1136 = vcmp.lt.s32.totalorder %v680, 111
        %v1137 = vsel %vm1136, %v1129, %v1133
        %v1138 = vsel %vm1136, %v1131, %v1135
        %v1139 = vsel %vm1136, %v1125, %v1129
        %v1140 = vsel %vm1136, %v1127, %v1131
        %v1141 = vsel %vm1136, %v1121, %v1125
        %v1142 = vsel %vm1136, %v1123, %v1127
        %v1143 = vsel %vm1136, %v1133, %v1121
        %v1144 = vsel %vm1136, %v1135, %v1123
        %s1145 = scalar_lea.vmem %s11, 32
        %v1146 = vld [vmem:[%s1145] ss:$8 sm:$0xf]
        %v1148 = vlaneseq
        %v1149 = vshrl.u32 %v1148, 7
        %v1150 = vsub.s32 0, %v1149
        %v1151 = vrot.slane %v1146, %v1150
        %v1152 = vlaneseq
        %v1153 = vshrl.u32 %v1152, 7
        %v1154 = vsub.s32 1, %v1153
        %v1155 = vrot.slane %v1146, %v1154
        %v1156 = vlaneseq
        %v1157 = vshrl.u32 %v1156, 7
        %v1158 = vsub.s32 2, %v1157
        %v1159 = vrot.slane %v1146, %v1158
        %v1160 = vlaneseq
        %v1161 = vshrl.u32 %v1160, 7
        %v1162 = vsub.s32 3, %v1161
        %v1163 = vrot.slane %v1146, %v1162
        %v1168 = vmul.f32 %v1141, %v1151
        %v1169 = vmul.f32 %v1139, %v1155
        %v1170 = vmul.f32 %v1137, %v1159
        %v1171 = vmul.f32 %v1143, %v1163
        %v1172 = vmul.f32 %v1142, %v1151
        %v1173 = vmul.f32 %v1140, %v1155
        %v1174 = vmul.f32 %v1138, %v1159
        %v1175 = vmul.f32 %v1144, %v1163
        %v1176 = vpack.c.bf16 %v1172, %v1168
        %v1177 = vpack.c.bf16 %v1173, %v1169
        %v1178 = vpack.c.bf16 %v1174, %v1170
        %v1179 = vpack.c.bf16 %v1175, %v1171
        %1180 = vst [vmem:[#allocation2 + $0x100] sm:$0xff] %v1176
        %1181 = vst [vmem:[#allocation2 + $0x108] sm:$0xff] %v1177
        %1182 = vst [vmem:[#allocation2 + $0x110] sm:$0xff] %v1178
        %1183 = vst [vmem:[#allocation2 + $0x118] sm:$0xff] %v1179
        %v1184 = vld [vmem:[#allocation3] sm:$0xff]
        %v1185 = vld [vmem:[#allocation3 + $0x8] sm:$0xff]
        %v1186 = vld [vmem:[#allocation2] sm:$0xff]
        %v1187 = vld [vmem:[#allocation2 + $0x8] sm:$0xff]
        %v1188 = vld [vmem:[#allocation2 + $0x10] sm:$0xff]
        %v1189 = vld [vmem:[#allocation2 + $0x18] sm:$0xff]
        %v1190 = vld [vmem:[#allocation2 + $0x20] sm:$0xff]
        %v1191 = vld [vmem:[#allocation2 + $0x28] sm:$0xff]
        %v1192 = vld [vmem:[#allocation2 + $0x30] sm:$0xff]
        %v1193 = vld [vmem:[#allocation2 + $0x38] sm:$0xff]
        %v1194 = vld [vmem:[#allocation2 + $0x40] sm:$0xff]
        %v1195 = vld [vmem:[#allocation2 + $0x48] sm:$0xff]
        %v1196 = vld [vmem:[#allocation2 + $0x50] sm:$0xff]
        %v1197 = vld [vmem:[#allocation2 + $0x58] sm:$0xff]
        %v1198 = vld [vmem:[#allocation2 + $0x60] sm:$0xff]
        %v1199 = vld [vmem:[#allocation2 + $0x68] sm:$0xff]
        %v1200 = vld [vmem:[#allocation2 + $0x70] sm:$0xff]
        %v1201 = vld [vmem:[#allocation2 + $0x78] sm:$0xff]
        %v1202 = vld [vmem:[#allocation2 + $0x80] sm:$0xff]
        %v1203 = vld [vmem:[#allocation2 + $0x88] sm:$0xff]
        %v1204 = vld [vmem:[#allocation2 + $0x90] sm:$0xff]
        %v1205 = vld [vmem:[#allocation2 + $0x98] sm:$0xff]
        %v1206 = vld [vmem:[#allocation2 + $0xa0] sm:$0xff]
        %v1207 = vld [vmem:[#allocation2 + $0xa8] sm:$0xff]
        %v1208 = vld [vmem:[#allocation2 + $0xb0] sm:$0xff]
        %v1209 = vld [vmem:[#allocation2 + $0xb8] sm:$0xff]
        %v1210 = vld [vmem:[#allocation2 + $0xc0] sm:$0xff]
        %v1211 = vld [vmem:[#allocation2 + $0xc8] sm:$0xff]
        %v1212 = vld [vmem:[#allocation2 + $0xd0] sm:$0xff]
        %v1213 = vld [vmem:[#allocation2 + $0xd8] sm:$0xff]
        %v1214 = vld [vmem:[#allocation2 + $0xe0] sm:$0xff]
        %v1215 = vld [vmem:[#allocation2 + $0xe8] sm:$0xff]
        %v1216 = vld [vmem:[#allocation2 + $0xf0] sm:$0xff]
        %v1217 = vld [vmem:[#allocation2 + $0xf8] sm:$0xff]
        %v1218 = vld [vmem:[#allocation2 + $0x100] sm:$0xff]
        %v1219 = vld [vmem:[#allocation2 + $0x108] sm:$0xff]
        %v1220 = vld [vmem:[#allocation2 + $0x110] sm:$0xff]
        %v1221 = vld [vmem:[#allocation2 + $0x118] sm:$0xff]
        %v1222 = vld [vmem:[%s2] sm:$0xff]
        %v1223 = vld [vmem:[%s2 + $0x8] sm:$0xff]
        %1225 = vset.pattern.permute.xlu0 0
        %1226 = vperm.xlu0 %1225, %v1222
        %v1227 = vpop.permute.xlu0 %1226
        %1230 = vset.pattern.permute.xlu0 0
        %1231 = vperm.xlu0 %1230, %v1223
        %v1232 = vpop.permute.xlu0 %1231
        %v1236 = vunpack.c.l.b16 %v1184
        %v1237 = vunpack.c.h.b16 %v1184
        %v1238 = vunpack.c.l.b16 %v1185
        %v1239 = vunpack.c.h.b16 %v1185
        %v1240 = vpack.c.b16 %v1238, %v1236
        %v1241 = vpack.c.b16 %v1239, %v1237
        %vm1243 = vcmask 130048
        %v1245 = vsel %vm1243, %v1241, 0
        %1247 = vmatprep.subr.bf16.mxu0 %v1187
        %1248 = vmatpush1.bf16.msra.mxu0 %v1186
        %1249 = vmatprep.subr.bf16.mxu0 %v1191
        %1250 = vmatpush1.bf16.msra.mxu0 %v1190
        %1251 = vmatprep.subr.bf16.mxu0 %v1195
        %1252 = vmatpush1.bf16.msra.mxu0 %v1194
        %1253 = vmatprep.subr.bf16.mxu0 %v1199
        %1254 = vmatpush1.bf16.msra.mxu0 %v1198
        %1255 = vmatprep.subr.bf16.mxu0 %v1203
        %1256 = vmatpush1.bf16.msra.mxu0 %v1202
        %1257 = vmatprep.subr.bf16.mxu0 %v1207
        %1258 = vmatpush1.bf16.msra.mxu0 %v1206
        %1259 = vmatprep.subr.bf16.mxu0 %v1211
        %1260 = vmatpush1.bf16.msra.mxu0 %v1210
        %1261 = vmatprep.subr.bf16.mxu0 %v1215
        %1262 = vmatpush1.bf16.msra.mxu0 %v1214
        %1263 = vmatprep.subr.bf16.mxu0 %v1219
        %1264 = vmatpush1.bf16.msra.mxu0 %v1218
        %1265 = vmatprep.subr.bf16.mxu0 0
        %1266 = vmatpush1.bf16.msra.mxu0 0
        %1267 = vmatprep.subr.bf16.mxu0 0
        %1268 = vmatpush1.bf16.msra.mxu0 0
        %1269 = vmatprep.subr.bf16.mxu0 0
        %1270 = vmatpush1.bf16.msra.mxu0 0
        %1271 = vmatprep.subr.bf16.mxu0 0
        %1272 = vmatpush1.bf16.msra.mxu0 0
        %1273 = vmatprep.subr.bf16.mxu0 0
        %1274 = vmatpush1.bf16.msra.mxu0 0
        %1275 = vmatprep.subr.bf16.mxu0 0
        %1276 = vmatpush1.bf16.msra.mxu0 0
        %1277 = vmatprep.subr.bf16.mxu0 0
        %1278 = vmatpush1.bf16.msra.mxu0 0
        %1279 = vmatprep.mubr.bf16.mxu0 %v1245
        %1280 = vmatmul.mubr.bf16.gmra.mrb[0].mxu0 %v1240
        %v1281 = vpop.f32.mrb[0].mxu0
        %v1282 = vadd.f32 %v1227, %v1281
        %v1283 = vpop.f32.mrb[0].mxu0
        %v1284 = vadd.f32 %v1227, %v1283
        %v1285 = vpop.f32.mrb[0].mxu0
        %v1286 = vadd.f32 %v1232, %v1285
        %v1287 = vpop.f32.mrb[0].mxu0
        %v1288 = vadd.f32 %v1232, %v1287
        %1289 = vdwg.mxu0
        %1290 = vmatprep.subr.bf16.mxu0 %v1189
        %1291 = vmatpush1.bf16.msra.mxu0 %v1188
        %1292 = vmatprep.subr.bf16.mxu0 %v1193
        %1293 = vmatpush1.bf16.msra.mxu0 %v1192
        %1294 = vmatprep.subr.bf16.mxu0 %v1197
        %1295 = vmatpush1.bf16.msra.mxu0 %v1196
        %1296 = vmatprep.subr.bf16.mxu0 %v1201
        %1297 = vmatpush1.bf16.msra.mxu0 %v1200
        %1298 = vmatprep.subr.bf16.mxu0 %v1205
        %1299 = vmatpush1.bf16.msra.mxu0 %v1204
        %1300 = vmatprep.subr.bf16.mxu0 %v1209
        %1301 = vmatpush1.bf16.msra.mxu0 %v1208
        %1302 = vmatprep.subr.bf16.mxu0 %v1213
        %1303 = vmatpush1.bf16.msra.mxu0 %v1212
        %1304 = vmatprep.subr.bf16.mxu0 %v1217
        %1305 = vmatpush1.bf16.msra.mxu0 %v1216
        %1306 = vmatprep.subr.bf16.mxu0 %v1221
        %1307 = vmatpush1.bf16.msra.mxu0 %v1220
        %1308 = vmatprep.subr.bf16.mxu0 0
        %1309 = vmatpush1.bf16.msra.mxu0 0
        %1310 = vmatprep.subr.bf16.mxu0 0
        %1311 = vmatpush1.bf16.msra.mxu0 0
        %1312 = vmatprep.subr.bf16.mxu0 0
        %1313 = vmatpush1.bf16.msra.mxu0 0
        %1314 = vmatprep.subr.bf16.mxu0 0
        %1315 = vmatpush1.bf16.msra.mxu0 0
        %1316 = vmatprep.subr.bf16.mxu0 0
        %1317 = vmatpush1.bf16.msra.mxu0 0
        %1318 = vmatprep.subr.bf16.mxu0 0
        %1319 = vmatpush1.bf16.msra.mxu0 0
        %1320 = vmatprep.subr.bf16.mxu0 0
        %1321 = vmatpush1.bf16.msra.mxu0 0
        %1322 = vmatprep.mubr.bf16.mxu0 %v1245
        %1323 = vmatmul.mubr.bf16.gmra.mrb[0].mxu0 %v1240
        %v1324 = vpop.f32.mrb[0].mxu0
        %v1325 = vadd.f32 %v1227, %v1324
        %v1326 = vpop.f32.mrb[0].mxu0
        %v1327 = vadd.f32 %v1227, %v1326
        %v1328 = vpop.f32.mrb[0].mxu0
        %v1329 = vadd.f32 %v1232, %v1328
        %v1330 = vpop.f32.mrb[0].mxu0
        %v1331 = vadd.f32 %v1232, %v1330
        %1332 = vdwg.mxu0
        %v1333 = vmul.f32 %v1282, %v655
        %v1334 = vmul.f32 %v1284, %v656
        %v1335 = vmul.f32 %v1325, %v657
        %v1336 = vmul.f32 %v1327, %v658
        %v1337 = vmul.f32 %v1286, %v659
        %v1338 = vmul.f32 %v1288, %v660
        %v1339 = vmul.f32 %v1329, %v661
        %v1340 = vmul.f32 %v1331, %v662
        %v1341 = vmul.f32 %v522, %v611
        %v1342 = vmul.f32 %v523, %v612
        %v1343 = vmul.f32 %v524, %v613
        %v1344 = vmul.f32 %v525, %v614
        %v1345 = vmul.f32 %v526, %v615
        %v1346 = vmul.f32 %v527, %v616
        %v1347 = vmul.f32 %v528, %v617
        %v1348 = vmul.f32 %v529, %v618
        %v1349 = vadd.f32 %v1333, %v1341
        %v1350 = vadd.f32 %v1334, %v1342
        %v1351 = vadd.f32 %v1335, %v1343
        %v1352 = vadd.f32 %v1336, %v1344
        %v1353 = vadd.f32 %v1337, %v1345
        %v1354 = vadd.f32 %v1338, %v1346
        %v1355 = vadd.f32 %v1339, %v1347
        %v1356 = vadd.f32 %v1340, %v1348
        %v1357 = vmax.f32 %v1349, 0.0
        %v1358 = vmax.f32 %v1350, 0.0
        %v1359 = vmax.f32 %v1351, 0.0
        %v1360 = vmax.f32 %v1352, 0.0
        %v1361 = vmax.f32 %v1353, 0.0
        %v1362 = vmax.f32 %v1354, 0.0
        %v1363 = vmax.f32 %v1355, 0.0
        %v1364 = vmax.f32 %v1356, 0.0
        %1365 = vrot.lane.b32.xlu0 %v1357, 17
        %v1366 = vpop.permute.xlu0 %1365
        %1367 = vrot.lane.b32.xlu0 %v1361, 17
        %v1368 = vpop.permute.xlu0 %1367
        %1369 = vrot.lane.b32.xlu0 %v1358, 17
        %v1370 = vpop.permute.xlu0 %1369
        %1371 = vrot.lane.b32.xlu0 %v1362, 17
        %v1372 = vpop.permute.xlu0 %1371
        %1373 = vrot.lane.b32.xlu0 %v1359, 17
        %v1374 = vpop.permute.xlu0 %1373
        %1375 = vrot.lane.b32.xlu0 %v1363, 17
        %v1376 = vpop.permute.xlu0 %1375
        %1377 = vrot.lane.b32.xlu0 %v1360, 17
        %v1378 = vpop.permute.xlu0 %1377
        %1379 = vrot.lane.b32.xlu0 %v1364, 17
        %v1380 = vpop.permute.xlu0 %1379
        %v1381 = vsel %vm681, %v1374, %v1378
        %v1382 = vsel %vm681, %v1376, %v1380
        %v1383 = vsel %vm681, %v1370, %v1374
        %v1384 = vsel %vm681, %v1372, %v1376
        %v1385 = vsel %vm681, %v1366, %v1370
        %v1386 = vsel %vm681, %v1368, %v1372
        %v1387 = vsel %vm681, %v1378, %v1366
        %v1388 = vsel %vm681, %v1380, %v1368
        %v1389 = vld [vmem:[%s11] ss:$8 sm:$0xf]
        %v1391 = vlaneseq
        %v1392 = vshrl.u32 %v1391, 7
        %v1393 = vsub.s32 0, %v1392
        %v1394 = vrot.slane %v1389, %v1393
        %v1395 = vlaneseq
        %v1396 = vshrl.u32 %v1395, 7
        %v1397 = vsub.s32 1, %v1396
        %v1398 = vrot.slane %v1389, %v1397
        %v1399 = vlaneseq
        %v1400 = vshrl.u32 %v1399, 7
        %v1401 = vsub.s32 2, %v1400
        %v1402 = vrot.slane %v1389, %v1401
        %v1403 = vlaneseq
        %v1404 = vshrl.u32 %v1403, 7
        %v1405 = vsub.s32 3, %v1404
        %v1406 = vrot.slane %v1389, %v1405
        %v1411 = vmul.f32 %v1387, %v1394
        %v1412 = vmul.f32 %v1385, %v1398
        %v1413 = vmul.f32 %v1383, %v1402
        %v1414 = vmul.f32 %v1381, %v1406
        %v1415 = vmul.f32 %v1388, %v1394
        %v1416 = vmul.f32 %v1386, %v1398
        %v1417 = vmul.f32 %v1384, %v1402
        %v1418 = vmul.f32 %v1382, %v1406
        %v1419 = vpack.c.bf16 %v1415, %v1411
        %v1420 = vpack.c.bf16 %v1416, %v1412
        %v1421 = vpack.c.bf16 %v1417, %v1413
        %v1422 = vpack.c.bf16 %v1418, %v1414
        %1423 = vst [vmem:[#allocation2] sm:$0xff] %v1419
        %1424 = vst [vmem:[#allocation2 + $0x8] sm:$0xff] %v1420
        %1425 = vst [vmem:[#allocation2 + $0x10] sm:$0xff] %v1421
        %1426 = vst [vmem:[#allocation2 + $0x18] sm:$0xff] %v1422
        %1427 = vrot.lane.b32.xlu0 %v1357, 16
        %v1428 = vpop.permute.xlu0 %1427
        %1429 = vrot.lane.b32.xlu0 %v1361, 16
        %v1430 = vpop.permute.xlu0 %1429
        %1431 = vrot.lane.b32.xlu0 %v1358, 16
        %v1432 = vpop.permute.xlu0 %1431
        %1433 = vrot.lane.b32.xlu0 %v1362, 16
        %v1434 = vpop.permute.xlu0 %1433
        %1435 = vrot.lane.b32.xlu0 %v1359, 16
        %v1436 = vpop.permute.xlu0 %1435
        %1437 = vrot.lane.b32.xlu0 %v1363, 16
        %v1438 = vpop.permute.xlu0 %1437
        %1439 = vrot.lane.b32.xlu0 %v1360, 16
        %v1440 = vpop.permute.xlu0 %1439
        %1441 = vrot.lane.b32.xlu0 %v1364, 16
        %v1442 = vpop.permute.xlu0 %1441
        %v1443 = vsel %vm744, %v1436, %v1440
        %v1444 = vsel %vm744, %v1438, %v1442
        %v1445 = vsel %vm744, %v1432, %v1436
        %v1446 = vsel %vm744, %v1434, %v1438
        %v1447 = vsel %vm744, %v1428, %v1432
        %v1448 = vsel %vm744, %v1430, %v1434
        %v1449 = vsel %vm744, %v1440, %v1428
        %v1450 = vsel %vm744, %v1442, %v1430
        %v1451 = vld [vmem:[%s753] ss:$8 sm:$0xf]
        %v1453 = vlaneseq
        %v1454 = vshrl.u32 %v1453, 7
        %v1455 = vsub.s32 0, %v1454
        %v1456 = vrot.slane %v1451, %v1455
        %v1457 = vlaneseq
        %v1458 = vshrl.u32 %v1457, 7
        %v1459 = vsub.s32 1, %v1458
        %v1460 = vrot.slane %v1451, %v1459
        %v1461 = vlaneseq
        %v1462 = vshrl.u32 %v1461, 7
        %v1463 = vsub.s32 2, %v1462
        %v1464 = vrot.slane %v1451, %v1463
        %v1465 = vlaneseq
        %v1466 = vshrl.u32 %v1465, 7
        %v1467 = vsub.s32 3, %v1466
        %v1468 = vrot.slane %v1451, %v1467
        %v1473 = vmul.f32 %v1449, %v1456
        %v1474 = vmul.f32 %v1447, %v1460
        %v1475 = vmul.f32 %v1445, %v1464
        %v1476 = vmul.f32 %v1443, %v1468
        %v1477 = vmul.f32 %v1450, %v1456
        %v1478 = vmul.f32 %v1448, %v1460
        %v1479 = vmul.f32 %v1446, %v1464
        %v1480 = vmul.f32 %v1444, %v1468
        %v1481 = vpack.c.bf16 %v1477, %v1473
        %v1482 = vpack.c.bf16 %v1478, %v1474
        %v1483 = vpack.c.bf16 %v1479, %v1475
        %v1484 = vpack.c.bf16 %v1480, %v1476
        %1485 = vst [vmem:[#allocation2 + $0x20] sm:$0xff] %v1481
        %1486 = vst [vmem:[#allocation2 + $0x28] sm:$0xff] %v1482
        %1487 = vst [vmem:[#allocation2 + $0x30] sm:$0xff] %v1483
        %1488 = vst [vmem:[#allocation2 + $0x38] sm:$0xff] %v1484
        %1489 = vrot.lane.b32.xlu0 %v1357, 15
        %v1490 = vpop.permute.xlu0 %1489
        %1491 = vrot.lane.b32.xlu0 %v1361, 15
        %v1492 = vpop.permute.xlu0 %1491
        %1493 = vrot.lane.b32.xlu0 %v1358, 15
        %v1494 = vpop.permute.xlu0 %1493
        %1495 = vrot.lane.b32.xlu0 %v1362, 15
        %v1496 = vpop.permute.xlu0 %1495
        %1497 = vrot.lane.b32.xlu0 %v1359, 15
        %v1498 = vpop.permute.xlu0 %1497
        %1499 = vrot.lane.b32.xlu0 %v1363, 15
        %v1500 = vpop.permute.xlu0 %1499
        %1501 = vrot.lane.b32.xlu0 %v1360, 15
        %v1502 = vpop.permute.xlu0 %1501
        %1503 = vrot.lane.b32.xlu0 %v1364, 15
        %v1504 = vpop.permute.xlu0 %1503
        %v1505 = vsel %vm808, %v1498, %v1502
        %v1506 = vsel %vm808, %v1500, %v1504
        %v1507 = vsel %vm808, %v1494, %v1498
        %v1508 = vsel %vm808, %v1496, %v1500
        %v1509 = vsel %vm808, %v1490, %v1494
        %v1510 = vsel %vm808, %v1492, %v1496
        %v1511 = vsel %vm808, %v1502, %v1490
        %v1512 = vsel %vm808, %v1504, %v1492
        %v1513 = vld [vmem:[%s817] ss:$8 sm:$0xf]
        %v1515 = vlaneseq
        %v1516 = vshrl.u32 %v1515, 7
        %v1517 = vsub.s32 0, %v1516
        %v1518 = vrot.slane %v1513, %v1517
        %v1519 = vlaneseq
        %v1520 = vshrl.u32 %v1519, 7
        %v1521 = vsub.s32 1, %v1520
        %v1522 = vrot.slane %v1513, %v1521
        %v1523 = vlaneseq
        %v1524 = vshrl.u32 %v1523, 7
        %v1525 = vsub.s32 2, %v1524
        %v1526 = vrot.slane %v1513, %v1525
        %v1527 = vlaneseq
        %v1528 = vshrl.u32 %v1527, 7
        %v1529 = vsub.s32 3, %v1528
        %v1530 = vrot.slane %v1513, %v1529
        %v1535 = vmul.f32 %v1511, %v1518
        %v1536 = vmul.f32 %v1509, %v1522
        %v1537 = vmul.f32 %v1507, %v1526
        %v1538 = vmul.f32 %v1505, %v1530
        %v1539 = vmul.f32 %v1512, %v1518
        %v1540 = vmul.f32 %v1510, %v1522
        %v1541 = vmul.f32 %v1508, %v1526
        %v1542 = vmul.f32 %v1506, %v1530
        %v1543 = vpack.c.bf16 %v1539, %v1535
        %v1544 = vpack.c.bf16 %v1540, %v1536
        %v1545 = vpack.c.bf16 %v1541, %v1537
        %v1546 = vpack.c.bf16 %v1542, %v1538
        %1547 = vst [vmem:[#allocation2 + $0x40] sm:$0xff] %v1543
        %1548 = vst [vmem:[#allocation2 + $0x48] sm:$0xff] %v1544
        %1549 = vst [vmem:[#allocation2 + $0x50] sm:$0xff] %v1545
        %1550 = vst [vmem:[#allocation2 + $0x58] sm:$0xff] %v1546
        %1551 = vrot.lane.b32.xlu0 %v1357, 1
        %v1552 = vpop.permute.xlu0 %1551
        %1553 = vrot.lane.b32.xlu0 %v1361, 1
        %v1554 = vpop.permute.xlu0 %1553
        %1555 = vrot.lane.b32.xlu0 %v1358, 1
        %v1556 = vpop.permute.xlu0 %1555
        %1557 = vrot.lane.b32.xlu0 %v1362, 1
        %v1558 = vpop.permute.xlu0 %1557
        %1559 = vrot.lane.b32.xlu0 %v1359, 1
        %v1560 = vpop.permute.xlu0 %1559
        %1561 = vrot.lane.b32.xlu0 %v1363, 1
        %v1562 = vpop.permute.xlu0 %1561
        %1563 = vrot.lane.b32.xlu0 %v1360, 1
        %v1564 = vpop.permute.xlu0 %1563
        %1565 = vrot.lane.b32.xlu0 %v1364, 1
        %v1566 = vpop.permute.xlu0 %1565
        %v1567 = vsel %vm872, %v1560, %v1564
        %v1568 = vsel %vm872, %v1562, %v1566
        %v1569 = vsel %vm872, %v1556, %v1560
        %v1570 = vsel %vm872, %v1558, %v1562
        %v1571 = vsel %vm872, %v1552, %v1556
        %v1572 = vsel %vm872, %v1554, %v1558
        %v1573 = vsel %vm872, %v1564, %v1552
        %v1574 = vsel %vm872, %v1566, %v1554
        %v1575 = vld [vmem:[%s881] ss:$8 sm:$0xf]
        %v1577 = vlaneseq
        %v1578 = vshrl.u32 %v1577, 7
        %v1579 = vsub.s32 0, %v1578
        %v1580 = vrot.slane %v1575, %v1579
        %v1581 = vlaneseq
        %v1582 = vshrl.u32 %v1581, 7
        %v1583 = vsub.s32 1, %v1582
        %v1584 = vrot.slane %v1575, %v1583
        %v1585 = vlaneseq
        %v1586 = vshrl.u32 %v1585, 7
        %v1587 = vsub.s32 2, %v1586
        %v1588 = vrot.slane %v1575, %v1587
        %v1589 = vlaneseq
        %v1590 = vshrl.u32 %v1589, 7
        %v1591 = vsub.s32 3, %v1590
        %v1592 = vrot.slane %v1575, %v1591
        %v1597 = vmul.f32 %v1573, %v1580
        %v1598 = vmul.f32 %v1571, %v1584
        %v1599 = vmul.f32 %v1569, %v1588
        %v1600 = vmul.f32 %v1567, %v1592
        %v1601 = vmul.f32 %v1574, %v1580
        %v1602 = vmul.f32 %v1572, %v1584
        %v1603 = vmul.f32 %v1570, %v1588
        %v1604 = vmul.f32 %v1568, %v1592
        %v1605 = vpack.c.bf16 %v1601, %v1597
        %v1606 = vpack.c.bf16 %v1602, %v1598
        %v1607 = vpack.c.bf16 %v1603, %v1599
        %v1608 = vpack.c.bf16 %v1604, %v1600
        %1609 = vst [vmem:[#allocation2 + $0x60] sm:$0xff] %v1605
        %1610 = vst [vmem:[#allocation2 + $0x68] sm:$0xff] %v1606
        %1611 = vst [vmem:[#allocation2 + $0x70] sm:$0xff] %v1607
        %1612 = vst [vmem:[#allocation2 + $0x78] sm:$0xff] %v1608
        %v1613 = vpack.c.bf16 %v1361, %v1357
        %v1614 = vpack.c.bf16 %v1362, %v1358
        %v1615 = vpack.c.bf16 %v1363, %v1359
        %v1616 = vpack.c.bf16 %v1364, %v1360
        %1617 = vst [vmem:[#allocation2 + $0x80] sm:$0xff] %v1613
        %1618 = vst [vmem:[#allocation2 + $0x88] sm:$0xff] %v1614
        %1619 = vst [vmem:[#allocation2 + $0x90] sm:$0xff] %v1615
        %1620 = vst [vmem:[#allocation2 + $0x98] sm:$0xff] %v1616
        %1621 = vrot.lane.b32.xlu0 %v1357, 127
        %v1622 = vpop.permute.xlu0 %1621
        %1623 = vrot.lane.b32.xlu0 %v1361, 127
        %v1624 = vpop.permute.xlu0 %1623
        %1625 = vrot.lane.b32.xlu0 %v1358, 127
        %v1626 = vpop.permute.xlu0 %1625
        %1627 = vrot.lane.b32.xlu0 %v1362, 127
        %v1628 = vpop.permute.xlu0 %1627
        %1629 = vrot.lane.b32.xlu0 %v1359, 127
        %v1630 = vpop.permute.xlu0 %1629
        %1631 = vrot.lane.b32.xlu0 %v1363, 127
        %v1632 = vpop.permute.xlu0 %1631
        %1633 = vrot.lane.b32.xlu0 %v1360, 127
        %v1634 = vpop.permute.xlu0 %1633
        %1635 = vrot.lane.b32.xlu0 %v1364, 127
        %v1636 = vpop.permute.xlu0 %1635
        %v1637 = vsel %vm944, %v1630, %v1634
        %v1638 = vsel %vm944, %v1632, %v1636
        %v1639 = vsel %vm944, %v1626, %v1630
        %v1640 = vsel %vm944, %v1628, %v1632
        %v1641 = vsel %vm944, %v1622, %v1626
        %v1642 = vsel %vm944, %v1624, %v1628
        %v1643 = vsel %vm944, %v1634, %v1622
        %v1644 = vsel %vm944, %v1636, %v1624
        %v1645 = vld [vmem:[%s953] ss:$8 sm:$0xf]
        %v1647 = vlaneseq
        %v1648 = vshrl.u32 %v1647, 7
        %v1649 = vsub.s32 0, %v1648
        %v1650 = vrot.slane %v1645, %v1649
        %v1651 = vlaneseq
        %v1652 = vshrl.u32 %v1651, 7
        %v1653 = vsub.s32 1, %v1652
        %v1654 = vrot.slane %v1645, %v1653
        %v1655 = vlaneseq
        %v1656 = vshrl.u32 %v1655, 7
        %v1657 = vsub.s32 2, %v1656
        %v1658 = vrot.slane %v1645, %v1657
        %v1659 = vlaneseq
        %v1660 = vshrl.u32 %v1659, 7
        %v1661 = vsub.s32 3, %v1660
        %v1662 = vrot.slane %v1645, %v1661
        %v1667 = vmul.f32 %v1641, %v1650
        %v1668 = vmul.f32 %v1639, %v1654
        %v1669 = vmul.f32 %v1637, %v1658
        %v1670 = vmul.f32 %v1643, %v1662
        %v1671 = vmul.f32 %v1642, %v1650
        %v1672 = vmul.f32 %v1640, %v1654
        %v1673 = vmul.f32 %v1638, %v1658
        %v1674 = vmul.f32 %v1644, %v1662
        %v1675 = vpack.c.bf16 %v1671, %v1667
        %v1676 = vpack.c.bf16 %v1672, %v1668
        %v1677 = vpack.c.bf16 %v1673, %v1669
        %v1678 = vpack.c.bf16 %v1674, %v1670
        %1679 = vst [vmem:[#allocation2 + $0xa0] sm:$0xff] %v1675
        %1680 = vst [vmem:[#allocation2 + $0xa8] sm:$0xff] %v1676
        %1681 = vst [vmem:[#allocation2 + $0xb0] sm:$0xff] %v1677
        %1682 = vst [vmem:[#allocation2 + $0xb8] sm:$0xff] %v1678
        %1683 = vrot.lane.b32.xlu0 %v1357, 113
        %v1684 = vpop.permute.xlu0 %1683
        %1685 = vrot.lane.b32.xlu0 %v1361, 113
        %v1686 = vpop.permute.xlu0 %1685
        %1687 = vrot.lane.b32.xlu0 %v1358, 113
        %v1688 = vpop.permute.xlu0 %1687
        %1689 = vrot.lane.b32.xlu0 %v1362, 113
        %v1690 = vpop.permute.xlu0 %1689
        %1691 = vrot.lane.b32.xlu0 %v1359, 113
        %v1692 = vpop.permute.xlu0 %1691
        %1693 = vrot.lane.b32.xlu0 %v1363, 113
        %v1694 = vpop.permute.xlu0 %1693
        %1695 = vrot.lane.b32.xlu0 %v1360, 113
        %v1696 = vpop.permute.xlu0 %1695
        %1697 = vrot.lane.b32.xlu0 %v1364, 113
        %v1698 = vpop.permute.xlu0 %1697
        %v1699 = vsel %vm1008, %v1692, %v1696
        %v1700 = vsel %vm1008, %v1694, %v1698
        %v1701 = vsel %vm1008, %v1688, %v1692
        %v1702 = vsel %vm1008, %v1690, %v1694
        %v1703 = vsel %vm1008, %v1684, %v1688
        %v1704 = vsel %vm1008, %v1686, %v1690
        %v1705 = vsel %vm1008, %v1696, %v1684
        %v1706 = vsel %vm1008, %v1698, %v1686
        %v1707 = vld [vmem:[%s1017] ss:$8 sm:$0xf]
        %v1709 = vlaneseq
        %v1710 = vshrl.u32 %v1709, 7
        %v1711 = vsub.s32 0, %v1710
        %v1712 = vrot.slane %v1707, %v1711
        %v1713 = vlaneseq
        %v1714 = vshrl.u32 %v1713, 7
        %v1715 = vsub.s32 1, %v1714
        %v1716 = vrot.slane %v1707, %v1715
        %v1717 = vlaneseq
        %v1718 = vshrl.u32 %v1717, 7
        %v1719 = vsub.s32 2, %v1718
        %v1720 = vrot.slane %v1707, %v1719
        %v1721 = vlaneseq
        %v1722 = vshrl.u32 %v1721, 7
        %v1723 = vsub.s32 3, %v1722
        %v1724 = vrot.slane %v1707, %v1723
        %v1729 = vmul.f32 %v1703, %v1712
        %v1730 = vmul.f32 %v1701, %v1716
        %v1731 = vmul.f32 %v1699, %v1720
        %v1732 = vmul.f32 %v1705, %v1724
        %v1733 = vmul.f32 %v1704, %v1712
        %v1734 = vmul.f32 %v1702, %v1716
        %v1735 = vmul.f32 %v1700, %v1720
        %v1736 = vmul.f32 %v1706, %v1724
        %v1737 = vpack.c.bf16 %v1733, %v1729
        %v1738 = vpack.c.bf16 %v1734, %v1730
        %v1739 = vpack.c.bf16 %v1735, %v1731
        %v1740 = vpack.c.bf16 %v1736, %v1732
        %1741 = vst [vmem:[#allocation2 + $0xc0] sm:$0xff] %v1737
        %1742 = vst [vmem:[#allocation2 + $0xc8] sm:$0xff] %v1738
        %1743 = vst [vmem:[#allocation2 + $0xd0] sm:$0xff] %v1739
        %1744 = vst [vmem:[#allocation2 + $0xd8] sm:$0xff] %v1740
        %1745 = vrot.lane.b32.xlu0 %v1357, 112
        %v1746 = vpop.permute.xlu0 %1745
        %1747 = vrot.lane.b32.xlu0 %v1361, 112
        %v1748 = vpop.permute.xlu0 %1747
        %1749 = vrot.lane.b32.xlu0 %v1358, 112
        %v1750 = vpop.permute.xlu0 %1749
        %1751 = vrot.lane.b32.xlu0 %v1362, 112
        %v1752 = vpop.permute.xlu0 %1751
        %1753 = vrot.lane.b32.xlu0 %v1359, 112
        %v1754 = vpop.permute.xlu0 %1753
        %1755 = vrot.lane.b32.xlu0 %v1363, 112
        %v1756 = vpop.permute.xlu0 %1755
        %1757 = vrot.lane.b32.xlu0 %v1360, 112
        %v1758 = vpop.permute.xlu0 %1757
        %1759 = vrot.lane.b32.xlu0 %v1364, 112
        %v1760 = vpop.permute.xlu0 %1759
        %v1761 = vsel %vm1072, %v1754, %v1758
        %v1762 = vsel %vm1072, %v1756, %v1760
        %v1763 = vsel %vm1072, %v1750, %v1754
        %v1764 = vsel %vm1072, %v1752, %v1756
        %v1765 = vsel %vm1072, %v1746, %v1750
        %v1766 = vsel %vm1072, %v1748, %v1752
        %v1767 = vsel %vm1072, %v1758, %v1746
        %v1768 = vsel %vm1072, %v1760, %v1748
        %v1769 = vld [vmem:[%s1081] ss:$8 sm:$0xf]
        %v1771 = vlaneseq
        %v1772 = vshrl.u32 %v1771, 7
        %v1773 = vsub.s32 0, %v1772
        %v1774 = vrot.slane %v1769, %v1773
        %v1775 = vlaneseq
        %v1776 = vshrl.u32 %v1775, 7
        %v1777 = vsub.s32 1, %v1776
        %v1778 = vrot.slane %v1769, %v1777
        %v1779 = vlaneseq
        %v1780 = vshrl.u32 %v1779, 7
        %v1781 = vsub.s32 2, %v1780
        %v1782 = vrot.slane %v1769, %v1781
        %v1783 = vlaneseq
        %v1784 = vshrl.u32 %v1783, 7
        %v1785 = vsub.s32 3, %v1784
        %v1786 = vrot.slane %v1769, %v1785
        %v1791 = vmul.f32 %v1765, %v1774
        %v1792 = vmul.f32 %v1763, %v1778
        %v1793 = vmul.f32 %v1761, %v1782
        %v1794 = vmul.f32 %v1767, %v1786
        %v1795 = vmul.f32 %v1766, %v1774
        %v1796 = vmul.f32 %v1764, %v1778
        %v1797 = vmul.f32 %v1762, %v1782
        %v1798 = vmul.f32 %v1768, %v1786
        %v1799 = vpack.c.bf16 %v1795, %v1791
        %v1800 = vpack.c.bf16 %v1796, %v1792
        %v1801 = vpack.c.bf16 %v1797, %v1793
        %v1802 = vpack.c.bf16 %v1798, %v1794
        %1803 = vst [vmem:[#allocation2 + $0xe0] sm:$0xff] %v1799
        %1804 = vst [vmem:[#allocation2 + $0xe8] sm:$0xff] %v1800
        %1805 = vst [vmem:[#allocation2 + $0xf0] sm:$0xff] %v1801
        %1806 = vst [vmem:[#allocation2 + $0xf8] sm:$0xff] %v1802
        %1807 = vrot.lane.b32.xlu0 %v1357, 111
        %v1808 = vpop.permute.xlu0 %1807
        %1809 = vrot.lane.b32.xlu0 %v1361, 111
        %v1810 = vpop.permute.xlu0 %1809
        %1811 = vrot.lane.b32.xlu0 %v1358, 111
        %v1812 = vpop.permute.xlu0 %1811
        %1813 = vrot.lane.b32.xlu0 %v1362, 111
        %v1814 = vpop.permute.xlu0 %1813
        %1815 = vrot.lane.b32.xlu0 %v1359, 111
        %v1816 = vpop.permute.xlu0 %1815
        %1817 = vrot.lane.b32.xlu0 %v1363, 111
        %v1818 = vpop.permute.xlu0 %1817
        %1819 = vrot.lane.b32.xlu0 %v1360, 111
        %v1820 = vpop.permute.xlu0 %1819
        %1821 = vrot.lane.b32.xlu0 %v1364, 111
        %v1822 = vpop.permute.xlu0 %1821
        %v1823 = vsel %vm1136, %v1816, %v1820
        %v1824 = vsel %vm1136, %v1818, %v1822
        %v1825 = vsel %vm1136, %v1812, %v1816
        %v1826 = vsel %vm1136, %v1814, %v1818
        %v1827 = vsel %vm1136, %v1808, %v1812
        %v1828 = vsel %vm1136, %v1810, %v1814
        %v1829 = vsel %vm1136, %v1820, %v1808
        %v1830 = vsel %vm1136, %v1822, %v1810
        %v1831 = vld [vmem:[%s1145] ss:$8 sm:$0xf]
        %v1833 = vlaneseq
        %v1834 = vshrl.u32 %v1833, 7
        %v1835 = vsub.s32 0, %v1834
        %v1836 = vrot.slane %v1831, %v1835
        %v1837 = vlaneseq
        %v1838 = vshrl.u32 %v1837, 7
        %v1839 = vsub.s32 1, %v1838
        %v1840 = vrot.slane %v1831, %v1839
        %v1841 = vlaneseq
        %v1842 = vshrl.u32 %v1841, 7
        %v1843 = vsub.s32 2, %v1842
        %v1844 = vrot.slane %v1831, %v1843
        %v1845 = vlaneseq
        %v1846 = vshrl.u32 %v1845, 7
        %v1847 = vsub.s32 3, %v1846
        %v1848 = vrot.slane %v1831, %v1847
        %v1853 = vmul.f32 %v1827, %v1836
        %v1854 = vmul.f32 %v1825, %v1840
        %v1855 = vmul.f32 %v1823, %v1844
        %v1856 = vmul.f32 %v1829, %v1848
        %v1857 = vmul.f32 %v1828, %v1836
        %v1858 = vmul.f32 %v1826, %v1840
        %v1859 = vmul.f32 %v1824, %v1844
        %v1860 = vmul.f32 %v1830, %v1848
        %v1861 = vpack.c.bf16 %v1857, %v1853
        %v1862 = vpack.c.bf16 %v1858, %v1854
        %v1863 = vpack.c.bf16 %v1859, %v1855
        %v1864 = vpack.c.bf16 %v1860, %v1856
        %1865 = vst [vmem:[#allocation2 + $0x100] sm:$0xff] %v1861
        %1866 = vst [vmem:[#allocation2 + $0x108] sm:$0xff] %v1862
        %1867 = vst [vmem:[#allocation2 + $0x110] sm:$0xff] %v1863
        %1868 = vst [vmem:[#allocation2 + $0x118] sm:$0xff] %v1864
        %v1869 = vld [vmem:[#allocation6] sm:$0xff]
        %v1870 = vld [vmem:[#allocation6 + $0x8] sm:$0xff]
        %v1871 = vld [vmem:[#allocation2] sm:$0xff]
        %v1872 = vld [vmem:[#allocation2 + $0x8] sm:$0xff]
        %v1873 = vld [vmem:[#allocation2 + $0x10] sm:$0xff]
        %v1874 = vld [vmem:[#allocation2 + $0x18] sm:$0xff]
        %v1875 = vld [vmem:[#allocation2 + $0x20] sm:$0xff]
        %v1876 = vld [vmem:[#allocation2 + $0x28] sm:$0xff]
        %v1877 = vld [vmem:[#allocation2 + $0x30] sm:$0xff]
        %v1878 = vld [vmem:[#allocation2 + $0x38] sm:$0xff]
        %v1879 = vld [vmem:[#allocation2 + $0x40] sm:$0xff]
        %v1880 = vld [vmem:[#allocation2 + $0x48] sm:$0xff]
        %v1881 = vld [vmem:[#allocation2 + $0x50] sm:$0xff]
        %v1882 = vld [vmem:[#allocation2 + $0x58] sm:$0xff]
        %v1883 = vld [vmem:[#allocation2 + $0x60] sm:$0xff]
        %v1884 = vld [vmem:[#allocation2 + $0x68] sm:$0xff]
        %v1885 = vld [vmem:[#allocation2 + $0x70] sm:$0xff]
        %v1886 = vld [vmem:[#allocation2 + $0x78] sm:$0xff]
        %v1887 = vld [vmem:[#allocation2 + $0x80] sm:$0xff]
        %v1888 = vld [vmem:[#allocation2 + $0x88] sm:$0xff]
        %v1889 = vld [vmem:[#allocation2 + $0x90] sm:$0xff]
        %v1890 = vld [vmem:[#allocation2 + $0x98] sm:$0xff]
        %v1891 = vld [vmem:[#allocation2 + $0xa0] sm:$0xff]
        %v1892 = vld [vmem:[#allocation2 + $0xa8] sm:$0xff]
        %v1893 = vld [vmem:[#allocation2 + $0xb0] sm:$0xff]
        %v1894 = vld [vmem:[#allocation2 + $0xb8] sm:$0xff]
        %v1895 = vld [vmem:[#allocation2 + $0xc0] sm:$0xff]
        %v1896 = vld [vmem:[#allocation2 + $0xc8] sm:$0xff]
        %v1897 = vld [vmem:[#allocation2 + $0xd0] sm:$0xff]
        %v1898 = vld [vmem:[#allocation2 + $0xd8] sm:$0xff]
        %v1899 = vld [vmem:[#allocation2 + $0xe0] sm:$0xff]
        %v1900 = vld [vmem:[#allocation2 + $0xe8] sm:$0xff]
        %v1901 = vld [vmem:[#allocation2 + $0xf0] sm:$0xff]
        %v1902 = vld [vmem:[#allocation2 + $0xf8] sm:$0xff]
        %v1903 = vld [vmem:[#allocation2 + $0x100] sm:$0xff]
        %v1904 = vld [vmem:[#allocation2 + $0x108] sm:$0xff]
        %v1905 = vld [vmem:[#allocation2 + $0x110] sm:$0xff]
        %v1906 = vld [vmem:[#allocation2 + $0x118] sm:$0xff]
        %v1907 = vld [vmem:[%s4] sm:$0xff]
        %v1908 = vld [vmem:[%s4 + $0x8] sm:$0xff]
        %1910 = vset.pattern.permute.xlu0 0
        %1911 = vperm.xlu0 %1910, %v1907
        %v1912 = vpop.permute.xlu0 %1911
        %1915 = vset.pattern.permute.xlu0 0
        %1916 = vperm.xlu0 %1915, %v1908
        %v1917 = vpop.permute.xlu0 %1916
        %v1921 = vunpack.c.l.b16 %v1869
        %v1922 = vunpack.c.h.b16 %v1869
        %v1923 = vunpack.c.l.b16 %v1870
        %v1924 = vunpack.c.h.b16 %v1870
        %v1925 = vpack.c.b16 %v1923, %v1921
        %v1926 = vpack.c.b16 %v1924, %v1922
        %v1929 = vsel %vm1243, %v1926, 0
        %1931 = vmatprep.subr.bf16.mxu0 %v1872
        %1932 = vmatpush1.bf16.msra.mxu0 %v1871
        %1933 = vmatprep.subr.bf16.mxu0 %v1876
        %1934 = vmatpush1.bf16.msra.mxu0 %v1875
        %1935 = vmatprep.subr.bf16.mxu0 %v1880
        %1936 = vmatpush1.bf16.msra.mxu0 %v1879
        %1937 = vmatprep.subr.bf16.mxu0 %v1884
        %1938 = vmatpush1.bf16.msra.mxu0 %v1883
        %1939 = vmatprep.subr.bf16.mxu0 %v1888
        %1940 = vmatpush1.bf16.msra.mxu0 %v1887
        %1941 = vmatprep.subr.bf16.mxu0 %v1892
        %1942 = vmatpush1.bf16.msra.mxu0 %v1891
        %1943 = vmatprep.subr.bf16.mxu0 %v1896
        %1944 = vmatpush1.bf16.msra.mxu0 %v1895
        %1945 = vmatprep.subr.bf16.mxu0 %v1900
        %1946 = vmatpush1.bf16.msra.mxu0 %v1899
        %1947 = vmatprep.subr.bf16.mxu0 %v1904
        %1948 = vmatpush1.bf16.msra.mxu0 %v1903
        %1949 = vmatprep.subr.bf16.mxu0 0
        %1950 = vmatpush1.bf16.msra.mxu0 0
        %1951 = vmatprep.subr.bf16.mxu0 0
        %1952 = vmatpush1.bf16.msra.mxu0 0
        %1953 = vmatprep.subr.bf16.mxu0 0
        %1954 = vmatpush1.bf16.msra.mxu0 0
        %1955 = vmatprep.subr.bf16.mxu0 0
        %1956 = vmatpush1.bf16.msra.mxu0 0
        %1957 = vmatprep.subr.bf16.mxu0 0
        %1958 = vmatpush1.bf16.msra.mxu0 0
        %1959 = vmatprep.subr.bf16.mxu0 0
        %1960 = vmatpush1.bf16.msra.mxu0 0
        %1961 = vmatprep.subr.bf16.mxu0 0
        %1962 = vmatpush1.bf16.msra.mxu0 0
        %1963 = vmatprep.mubr.bf16.mxu0 %v1929
        %1964 = vmatmul.mubr.bf16.gmra.mrb[0].mxu0 %v1925
        %v1965 = vpop.f32.mrb[0].mxu0
        %v1966 = vadd.f32 %v1912, %v1965
        %v1967 = vpop.f32.mrb[0].mxu0
        %v1968 = vadd.f32 %v1912, %v1967
        %v1969 = vpop.f32.mrb[0].mxu0
        %v1970 = vadd.f32 %v1917, %v1969
        %v1971 = vpop.f32.mrb[0].mxu0
        %v1972 = vadd.f32 %v1917, %v1971
        %1973 = vdwg.mxu0
        %1974 = vmatprep.subr.bf16.mxu0 %v1874
        %1975 = vmatpush1.bf16.msra.mxu0 %v1873
        %1976 = vmatprep.subr.bf16.mxu0 %v1878
        %1977 = vmatpush1.bf16.msra.mxu0 %v1877
        %1978 = vmatprep.subr.bf16.mxu0 %v1882
        %1979 = vmatpush1.bf16.msra.mxu0 %v1881
        %1980 = vmatprep.subr.bf16.mxu0 %v1886
        %1981 = vmatpush1.bf16.msra.mxu0 %v1885
        %1982 = vmatprep.subr.bf16.mxu0 %v1890
        %1983 = vmatpush1.bf16.msra.mxu0 %v1889
        %1984 = vmatprep.subr.bf16.mxu0 %v1894
        %1985 = vmatpush1.bf16.msra.mxu0 %v1893
        %1986 = vmatprep.subr.bf16.mxu0 %v1898
        %1987 = vmatpush1.bf16.msra.mxu0 %v1897
        %1988 = vmatprep.subr.bf16.mxu0 %v1902
        %1989 = vmatpush1.bf16.msra.mxu0 %v1901
        %1990 = vmatprep.subr.bf16.mxu0 %v1906
        %1991 = vmatpush1.bf16.msra.mxu0 %v1905
        %1992 = vmatprep.subr.bf16.mxu0 0
        %1993 = vmatpush1.bf16.msra.mxu0 0
        %1994 = vmatprep.subr.bf16.mxu0 0
        %1995 = vmatpush1.bf16.msra.mxu0 0
        %1996 = vmatprep.subr.bf16.mxu0 0
        %1997 = vmatpush1.bf16.msra.mxu0 0
        %1998 = vmatprep.subr.bf16.mxu0 0
        %1999 = vmatpush1.bf16.msra.mxu0 0
        %2000 = vmatprep.subr.bf16.mxu0 0
        %2001 = vmatpush1.bf16.msra.mxu0 0
        %2002 = vmatprep.subr.bf16.mxu0 0
        %2003 = vmatpush1.bf16.msra.mxu0 0
        %2004 = vmatprep.subr.bf16.mxu0 0
        %2005 = vmatpush1.bf16.msra.mxu0 0
        %2006 = vmatprep.mubr.bf16.mxu0 %v1929
        %2007 = vmatmul.mubr.bf16.gmra.mrb[0].mxu0 %v1925
        %v2008 = vpop.f32.mrb[0].mxu0
        %v2009 = vadd.f32 %v1912, %v2008
        %v2010 = vpop.f32.mrb[0].mxu0
        %v2011 = vadd.f32 %v1912, %v2010
        %v2012 = vpop.f32.mrb[0].mxu0
        %v2013 = vadd.f32 %v1917, %v2012
        %v2014 = vpop.f32.mrb[0].mxu0
        %v2015 = vadd.f32 %v1917, %v2014
        %2016 = vdwg.mxu0
        %v2017 = vmul.f32 %v1966, %v655
        %v2018 = vmul.f32 %v1968, %v656
        %v2019 = vmul.f32 %v2009, %v657
        %v2020 = vmul.f32 %v2011, %v658
        %v2021 = vmul.f32 %v1970, %v659
        %v2022 = vmul.f32 %v1972, %v660
        %v2023 = vmul.f32 %v2013, %v661
        %v2024 = vmul.f32 %v2015, %v662
        %v2025 = vmul.f32 %v1357, %v611
        %v2026 = vmul.f32 %v1358, %v612
        %v2027 = vmul.f32 %v1359, %v613
        %v2028 = vmul.f32 %v1360, %v614
        %v2029 = vmul.f32 %v1361, %v615
        %v2030 = vmul.f32 %v1362, %v616
        %v2031 = vmul.f32 %v1363, %v617
        %v2032 = vmul.f32 %v1364, %v618
        %v2033 = vadd.f32 %v2017, %v2025
        %v2034 = vadd.f32 %v2018, %v2026
        %v2035 = vadd.f32 %v2019, %v2027
        %v2036 = vadd.f32 %v2020, %v2028
        %v2037 = vadd.f32 %v2021, %v2029
        %v2038 = vadd.f32 %v2022, %v2030
        %v2039 = vadd.f32 %v2023, %v2031
        %v2040 = vadd.f32 %v2024, %v2032
        %v2041 = vld [vmem:[%s12] ss:$2 sm:$0xf]
        %v2043 = vlaneseq
        %v2044 = vshrl.u32 %v2043, 7
        %v2045 = vsub.s32 0, %v2044
        %v2046 = vrot.slane %v2041, %v2045
        %v2047 = vlaneseq
        %v2048 = vshrl.u32 %v2047, 7
        %v2049 = vsub.s32 1, %v2048
        %v2050 = vrot.slane %v2041, %v2049
        %v2051 = vlaneseq
        %v2052 = vshrl.u32 %v2051, 7
        %v2053 = vsub.s32 2, %v2052
        %v2054 = vrot.slane %v2041, %v2053
        %v2055 = vlaneseq
        %v2056 = vshrl.u32 %v2055, 7
        %v2057 = vsub.s32 3, %v2056
        %v2058 = vrot.slane %v2041, %v2057
        %v2063 = vmul.f32 %v2033, %v2046
        %v2064 = vmul.f32 %v2034, %v2050
        %v2065 = vmul.f32 %v2035, %v2054
        %v2066 = vmul.f32 %v2036, %v2058
        %v2067 = vmul.f32 %v2037, %v2046
        %v2068 = vmul.f32 %v2038, %v2050
        %v2069 = vmul.f32 %v2039, %v2054
        %v2070 = vmul.f32 %v2040, %v2058
        %v2071 = vadd.f32 %v2063, %v2064
        %v2072 = vadd.f32 %v2071, %v2065
        %v2073 = vadd.f32 %v2072, %v2066
        %2074 = vadd.xlane.f32.xlu0 %v2073
        %v2075 = vpop.xlane.xlu0 %2074
        %v2076 = vadd.f32 %v2067, %v2068
        %v2077 = vadd.f32 %v2076, %v2069
        %v2078 = vadd.f32 %v2077, %v2070
        %2079 = vadd.xlane.f32.xlu0 %v2078
        %v2080 = vpop.xlane.xlu0 %2079
        %v2081 = vmul.f32 %v2075, 0.00390625
        %v2082 = vmul.f32 %v2080, 0.00390625
        %v2083 = vld [vmem:[%s7] sm:$0xff]
        %v2084 = vld [vmem:[%s7 + $0x8] sm:$0xff]
        %v2085 = vmul.f32 %v2083, %v2081
        %v2086 = vmul.f32 %v2084, %v2082
        %vm2087 = vcmask 31744
        %v2088 = vsel %vm2087, %v2085, 0.0
        %v2089 = vsel %vm2087, %v2086, 0.0
        %v2090 = vadd.f32 %v2088, %v2089
        %v2091 = vrot.slane %v2090, 4
        %v2092 = vadd.f32 %v2090, %v2091
        %v2093 = vrot.slane %v2092, 2
        %v2094 = vadd.f32 %v2092, %v2093
        %v2095 = vrot.slane %v2094, 1
        %v2096 = vadd.f32 %v2094, %v2095
        %v2097 = vld [vmem:[#allocation8] sm:$0x1]
        %v2098 = vadd.f32 %v2096, %v2097
        %v2099 = vmax.f32 %v2098, 0.0
        %v2100 = vld [vmem:[%s9] sm:$0xff]
        %v2101 = vld [vmem:[%s9 + $0x8] sm:$0xff]
        %v2102 = vlaneseq
        %v2103 = vshrl.u32 %v2102, 7
        %v2104 = vsub.s32 0, %v2103
        %v2105 = vrot.slane %v2099, %v2104
        %v2106 = vmul.f32 %v2100, %v2105
        %v2107 = vmul.f32 %v2101, %v2105
        %v2108 = vsel %vm2087, %v2106, 0.0
        %2109 = vadd.xlane.f32.xlu0 %v2108
        %v2110 = vpop.xlane.xlu0 %2109
        %v2111 = vsel %vm2087, %v2107, 0.0
        %2112 = vadd.xlane.f32.xlu0 %v2111
        %v2113 = vpop.xlane.xlu0 %2112
        %v2114 = vld [vmem:[%s10] sm:$0xff]
        %v2115 = vld [vmem:[%s10 + $0x8] sm:$0xff]
        %v2116 = vadd.f32 %v2110, %v2114
        %v2117 = vadd.f32 %v2113, %v2115
        %v2118 = vxor.u32 %v2116, 2147483648
        %v2119 = vxor.u32 %v2117, 2147483648
        %v2120 = vmul.f32 %v2118, 1.442695
        %v2121 = vpow.pop %v2120
        %v2122 = vmul.f32 %v2119, 1.442695
        %v2123 = vpow.pop %v2122
        %v2124 = vadd.f32 %v2121, 1.0
        %v2125 = vadd.f32 %v2123, 1.0
        %v2126 = vrcp.pop %v2124
        %v2127 = vmul.f32 1.0, %v2126
        %v2128 = vrcp.pop %v2125
        %v2129 = vmul.f32 1.0, %v2128
        %v2130 = vld [vmem:[%s572] ss:$2 sm:$0xf]
        %v2132 = vlaneseq
        %v2133 = vshrl.u32 %v2132, 7
        %v2134 = vsub.s32 0, %v2133
        %v2135 = vrot.slane %v2130, %v2134
        %v2136 = vlaneseq
        %v2137 = vshrl.u32 %v2136, 7
        %v2138 = vsub.s32 1, %v2137
        %v2139 = vrot.slane %v2130, %v2138
        %v2140 = vlaneseq
        %v2141 = vshrl.u32 %v2140, 7
        %v2142 = vsub.s32 2, %v2141
        %v2143 = vrot.slane %v2130, %v2142
        %v2144 = vlaneseq
        %v2145 = vshrl.u32 %v2144, 7
        %v2146 = vsub.s32 3, %v2145
        %v2147 = vrot.slane %v2130, %v2146
        %v2152 = vmul.f32 %v2033, %v2135
        %v2153 = vmul.f32 %v2034, %v2139
        %v2154 = vmul.f32 %v2035, %v2143
        %v2155 = vmul.f32 %v2036, %v2147
        %v2156 = vmul.f32 %v2037, %v2135
        %v2157 = vmul.f32 %v2038, %v2139
        %v2158 = vmul.f32 %v2039, %v2143
        %v2159 = vmul.f32 %v2040, %v2147
        %v2160 = vadd.f32 %v2152, %v2153
        %v2161 = vadd.f32 %v2160, %v2154
        %v2162 = vadd.f32 %v2161, %v2155
        %2163 = vadd.xlane.f32.xlu0 %v2162
        %v2164 = vpop.xlane.xlu0 %2163
        %v2165 = vadd.f32 %v2156, %v2157
        %v2166 = vadd.f32 %v2165, %v2158
        %v2167 = vadd.f32 %v2166, %v2159
        %2168 = vadd.xlane.f32.xlu0 %v2167
        %v2169 = vpop.xlane.xlu0 %2168
        %v2170 = vmul.f32 %v2164, 0.00390625
        %v2171 = vmul.f32 %v2169, 0.00390625
        %v2172 = vmul.f32 %v2083, %v2170
        %v2173 = vmul.f32 %v2084, %v2171
        %v2174 = vsel %vm2087, %v2172, 0.0
        %v2175 = vsel %vm2087, %v2173, 0.0
        %v2176 = vadd.f32 %v2174, %v2175
        %v2177 = vrot.slane %v2176, 4
        %v2178 = vadd.f32 %v2176, %v2177
        %v2179 = vrot.slane %v2178, 2
        %v2180 = vadd.f32 %v2178, %v2179
        %v2181 = vrot.slane %v2180, 1
        %v2182 = vadd.f32 %v2180, %v2181
        %v2183 = vadd.f32 %v2182, %v2097
        %v2184 = vmax.f32 %v2183, 0.0
        %v2185 = vlaneseq
        %v2186 = vshrl.u32 %v2185, 7
        %v2187 = vsub.s32 0, %v2186
        %v2188 = vrot.slane %v2184, %v2187
        %v2189 = vmul.f32 %v2100, %v2188
        %v2190 = vmul.f32 %v2101, %v2188
        %v2191 = vsel %vm2087, %v2189, 0.0
        %2192 = vadd.xlane.f32.xlu0 %v2191
        %v2193 = vpop.xlane.xlu0 %2192
        %v2194 = vsel %vm2087, %v2190, 0.0
        %2195 = vadd.xlane.f32.xlu0 %v2194
        %v2196 = vpop.xlane.xlu0 %2195
        %v2197 = vadd.f32 %v2193, %v2114
        %v2198 = vadd.f32 %v2196, %v2115
        %v2199 = vxor.u32 %v2197, 2147483648
        %v2200 = vxor.u32 %v2198, 2147483648
        %v2201 = vmul.f32 %v2199, 1.442695
        %v2202 = vpow.pop %v2201
        %v2203 = vmul.f32 %v2200, 1.442695
        %v2204 = vpow.pop %v2203
        %v2205 = vadd.f32 %v2202, 1.0
        %v2206 = vadd.f32 %v2204, 1.0
        %v2207 = vrcp.pop %v2205
        %v2208 = vmul.f32 1.0, %v2207
        %v2209 = vrcp.pop %v2206
        %v2210 = vmul.f32 1.0, %v2209
        %2212 = vset.pattern.permute.xlu0 0
        %2213 = vperm.xlu0 %2212, %v2127
        %v2214 = vpop.permute.xlu0 %2213
        %2217 = vset.pattern.permute.xlu0 0
        %2218 = vperm.xlu0 %2217, %v2129
        %v2219 = vpop.permute.xlu0 %2218
        %v2221 = vmul.f32 %v2214, %v2046
        %v2222 = vmul.f32 %v2214, %v2050
        %v2223 = vmul.f32 %v2214, %v2054
        %v2224 = vmul.f32 %v2214, %v2058
        %v2225 = vmul.f32 %v2219, %v2046
        %v2226 = vmul.f32 %v2219, %v2050
        %v2227 = vmul.f32 %v2219, %v2054
        %v2228 = vmul.f32 %v2219, %v2058
        %2230 = vset.pattern.permute.xlu0 0
        %2231 = vperm.xlu0 %2230, %v2208
        %v2232 = vpop.permute.xlu0 %2231
        %2235 = vset.pattern.permute.xlu0 0
        %2236 = vperm.xlu0 %2235, %v2210
        %v2237 = vpop.permute.xlu0 %2236
        %v2239 = vmul.f32 %v2232, %v2135
        %v2240 = vmul.f32 %v2232, %v2139
        %v2241 = vmul.f32 %v2232, %v2143
        %v2242 = vmul.f32 %v2232, %v2147
        %v2243 = vmul.f32 %v2237, %v2135
        %v2244 = vmul.f32 %v2237, %v2139
        %v2245 = vmul.f32 %v2237, %v2143
        %v2246 = vmul.f32 %v2237, %v2147
        %v2247 = vadd.f32 %v2221, %v2239
        %v2248 = vadd.f32 %v2222, %v2240
        %v2249 = vadd.f32 %v2223, %v2241
        %v2250 = vadd.f32 %v2224, %v2242
        %v2251 = vadd.f32 %v2225, %v2243
        %v2252 = vadd.f32 %v2226, %v2244
        %v2253 = vadd.f32 %v2227, %v2245
        %v2254 = vadd.f32 %v2228, %v2246
        %v2255 = vmul.f32 %v2033, %v2247
        %v2256 = vmul.f32 %v2034, %v2248
        %v2257 = vmul.f32 %v2035, %v2249
        %v2258 = vmul.f32 %v2036, %v2250
        %v2259 = vmul.f32 %v2037, %v2251
        %v2260 = vmul.f32 %v2038, %v2252
        %v2261 = vmul.f32 %v2039, %v2253
        %v2262 = vmul.f32 %v2040, %v2254
        %v2263 = vadd.f32 %v2255, %v522
        %v2264 = vadd.f32 %v2256, %v523
        %v2265 = vadd.f32 %v2257, %v524
        %v2266 = vadd.f32 %v2258, %v525
        %v2267 = vadd.f32 %v2259, %v526
        %v2268 = vadd.f32 %v2260, %v527
        %v2269 = vadd.f32 %v2261, %v528
        %v2270 = vadd.f32 %v2262, %v529
        %2271 = vst [vmem:[%s505] sm:$0xff] %v2263
        %2272 = vst [vmem:[%s505 + $0x8] sm:$0xff] %v2264
        %2273 = vst [vmem:[%s505 + $0x10] sm:$0xff] %v2265
        %2274 = vst [vmem:[%s505 + $0x18] sm:$0xff] %v2266
        %2275 = vst [vmem:[%s505 + $0x20] sm:$0xff] %v2267
        %2276 = vst [vmem:[%s505 + $0x28] sm:$0xff] %v2268
        %2277 = vst [vmem:[%s505 + $0x30] sm:$0xff] %v2269
        %2278 = vst [vmem:[%s505 + $0x38] sm:$0xff] %v2270
        %s2279 = sand.u32 %s325, 1
        %s2280 = scalar_lea.sflag [#allocation5], %s2279
        %s2281 = sand.u32 %s325, 1
        %s2282 = smul.addr %s2281, 64
        %s2283 = scalar_lea.vmem [#allocation9], %s2282
        // Predicated region
        $region85: #{tpu_custom_call.1} parent=71 // pred_check
          %p2284 = pneg %p335
        $region86: #{tpu_custom_call.1} parent=71 // pred_check_branch
          %2286 = sbr.rel (%p2284) target = $region88
        $region87: #{tpu_custom_call.1} parent=71 // pred_region
          %s2288 = ssub.s32 1024, 1024
          %2289 = vsyncadd %s2280, %s2288
          %s2290 = smul.addr %s29, 8
          %s2291 = smul.addr %s2290, 128
          %s2292 = scalar_lea.hbm %s13, %s2291
          %s2293 = sshll.u32 %s2283, 4
          %s2294 = int_to_ptr.vmem [resolvable:$true] %s2293
          %2299 = dma.vmem_to_hbm [thread:$0]  %s2294, 1024, %s2292, %s2280, 512, 512, 32
        $region88: #{tpu_custom_call.1} parent=71 // pred_fallthru
          _
      $region72: #{tpu_custom_call.1} parent=5 // pred_fallthru
        _
      %p2300 = scmp.le.s32.totalorder 2, %s24
      // Predicated region
      $region89: #{tpu_custom_call.1} parent=5 // pred_check
        %p2301 = pneg %p2300
      $region90: #{tpu_custom_call.1} parent=5 // pred_check_branch
        %2303 = sbr.rel (%p2301) target = $region92
      $region91: #{tpu_custom_call.1} parent=5 // pred_region
        %s2304 = ssub.s32 %s24, 2
        // Predicated region
        $region93: #{tpu_custom_call.1} parent=91 // pred_check
          %p2305 = pneg %p341
        $region94: #{tpu_custom_call.1} parent=91 // pred_check_branch
          %2307 = sbr.rel (%p2305) target = $region96
        $region95: #{tpu_custom_call.1} parent=91 // pred_region
          %s2308 = sand.u32 %s326, 1
          %s2309 = scalar_lea.sflag [#allocation5], %s2308
          %s2310 = sand.u32 %s326, 1
          %s2311 = smul.addr %s2310, 64
          %s2312 = scalar_lea.vmem [#allocation9], %s2311
          %2313 = dma.done %s2309, 1024
        $region96: #{tpu_custom_call.1} parent=91 // pred_fallthru
          _
      $region92: #{tpu_custom_call.1} parent=5 // pred_fallthru
        _
    $region6: #{tpu_custom_call.1} parent=1 // loop_footer
      %s28 = sadd.s32 1, %s24
    $region7: #{tpu_custom_call.1} parent=1 // loop_footer_branch
      %23 = sbr.rel target = $region3
    $region8: #{tpu_custom_call.1} parent=1 // loop_exit
      _
    %2314 = vsyncpa [#allocation4], 1
    %s2315 = scalar_lea.sflag [#allocation4], 1
    %2316 = vsyncpa %s2315, 1
    %2317 = vsyncpa [#allocation7], 1
    %2318 = vsyncpa [#allocation5], 1
    %s2319 = scalar_lea.sflag [#allocation5], 1
    %2320 = vsyncpa %s2319, 1

</llo_original>
